<compile_context>
chip_gen: v7x
topology: tpu7x:2x2x1
jax: 0.10.0
libtpu: 0.0.40
codegen_flags: <defaults>
</compile_context>

<pallas_src>
import functools

import numpy as np

import jax
import jax.numpy as jnp
from jax.experimental import pallas as pl
from jax.experimental.pallas import tpu as pltpu


LATENT = 1024  # fc31/fc32 output width (fixed by the PyTorch module)


def _round_up(v, m):
    return (v + m - 1) // m * m


def _bias_layout(hei, wid):
    """Static layout of the packed bias buffer: ((offset, width), ...), total, pad_feat."""
    feat = hei * wid // 4
    pad_feat = _round_up(feat, 128)
    half = (hei // 2) * (wid // 2)
    widths = (
        2 * half,       # b1 : conv1 output  (2 ch * (H/2)*(W/2))
        pad_feat,       # b2 : conv2 output, padded feat
        2 * LATENT,     # bfc: fused fc31|fc32
        pad_feat,       # b4 : fc4 output, padded feat
        4 * half,       # b5 : up5 output (4 ch * (H/2)*(W/2))
        hei * wid,      # b6 : up6 output (1 ch * H*W)
    )
    offs, off = [], 0
    for w in widths:
        offs.append((off, w))
        off += _round_up(w, 128)   # keep every segment lane-aligned
    return tuple(offs), off, pad_feat


# ------------------------------ Pallas kernel -------------------------------

def _vae_fused_kernel(x_ref, eps_ref,
                      w1_ref, w2_ref, wfc_ref, w4_ref, w5_ref, w6_ref,
                      bias_ref,
                      recon_ref, mu_ref, logvar_ref,
                      *, bias_offsets, latent):
    """Whole VAEMultiplex forward on VMEM-resident operands.

    Every layer is (bf16 x bf16 -> f32) matmul + f32 bias (+ activation);
    reparameterization z = mu + eps * exp(0.5*logvar) is fused.
    """

    def bias(idx):
        off, width = bias_offsets[idx]
        return bias_ref[:, off:off + width]            # static, lane-aligned slice

    def mm(a, w_ref, b):
        return jnp.dot(a.astype(jnp.bfloat16), w_ref[...],
                       preferred_element_type=jnp.float32) + b

    # ---- encoder ----
    h1 = jnp.maximum(mm(x_ref[...], w1_ref, bias(0)), 0.0)     # conv1 + ReLU
    f2 = jnp.maximum(mm(h1, w2_ref, bias(1)), 0.0)             # conv2 + ReLU (== flatten)
    stats = mm(f2, wfc_ref, bias(2))                           # fused fc31 | fc32
    mu = stats[:, :latent]
    logvar = stats[:, latent:]
    mu_ref[...] = mu
    logvar_ref[...] = logvar

    # ---- reparameterize (exp goes to the EUP slot) ----
    z = mu + eps_ref[...] * jnp.exp(0.5 * logvar)

    # ---- decoder ----
    f4 = jnp.maximum(mm(z, w4_ref, bias(3)), 0.0)              # fc4 + ReLU
    h5 = jnp.maximum(mm(f4, w5_ref, bias(4)), 0.0)             # up5 + ReLU
    h6 = jnp.maximum(mm(h5, w6_ref, bias(5)), 0.0)             # up6 + ReLU
    recon_ref[...] = jax.nn.sigmoid(h6)                        # sigmoid(ReLU(.)) as in reference


@functools.partial(jax.jit, static_argnames=("input_shape",))
def vae_multiplex_forward(params, x, eps, *, input_shape):
    """x: (N,1,H,W) f32 NCHW; eps: (N,1024) f32. Returns (recon, mu, logvar)."""
    hei, wid = input_shape
    hw = hei * wid
    n = x.shape[0]
    x_flat = x.reshape(n, hw).astype(jnp.float32)      # C == 1 -> flatten is a pure reshape
    eps_p = eps.astype(jnp.float32)

    bias_offsets, _, pad_feat = _bias_layout(hei, wid)
    w1, w2, wfc, w4, w5, w6 = params["weights"]
    bias_pack = params["bias_pack"]

    # Batch tiling: pad N up to a multiple of 8 and pick the largest tile
    # (<=256) that divides it; one grid axis, "parallel" -> both v7x TCs.
    n_pad = _round_up(max(n, 8), 8)
    bt = next(t for t in (256, 128, 64, 32, 16, 8) if n_pad % t == 0)
    if n_pad != n:
        x_flat = jnp.pad(x_flat, ((0, n_pad - n), (0, 0)))
        eps_p = jnp.pad(eps_p, ((0, n_pad - n), (0, 0)))
    grid = (n_pad // bt,)

    def row_spec(cols):
        return pl.BlockSpec((bt, cols), lambda i: (i, 0))

    def resident_spec(arr):                             # constant index -> no re-DMA
        return pl.BlockSpec(arr.shape, lambda i: (0, 0))

    in_specs = [
        row_spec(hw),                                   # x
        row_spec(LATENT),                               # eps
        resident_spec(w1), resident_spec(w2), resident_spec(wfc),
        resident_spec(w4), resident_spec(w5), resident_spec(w6),
        resident_spec(bias_pack),
    ]
    out_specs = (row_spec(hw), row_spec(LATENT), row_spec(LATENT))

    # Advisory cost so XLA can overlap this small call inside a larger jit.
    layer_dims = ((hw, w1.shape[1]), (w1.shape[1], pad_feat), (pad_feat, 2 * LATENT),
                  (LATENT, pad_feat), (pad_feat, w5.shape[1]), (w5.shape[1], hw))
    flops = 2 * n_pad * sum(k * m for k, m in layer_dims)
    transcendentals = n_pad * (LATENT + hw)             # exp in reparam + sigmoid
    param_bytes = sum(int(a.size) * a.dtype.itemsize
                      for a in (w1, w2, wfc, w4, w5, w6, bias_pack))
    act_bytes = (int(x_flat.size) + int(eps_p.size) + n_pad * (hw + 2 * LATENT)) * 4
    cost = pl.CostEstimate(flops=int(flops), transcendentals=int(transcendentals),
                           bytes_accessed=int(param_bytes + act_bytes))

    kernel = functools.partial(_vae_fused_kernel,
                               bias_offsets=bias_offsets, latent=LATENT)

    recon_flat, mu, logvar = pl.pallas_call(
        kernel,
        out_shape=(
            jax.ShapeDtypeStruct((n_pad, hw), jnp.float32),
            jax.ShapeDtypeStruct((n_pad, LATENT), jnp.float32),
            jax.ShapeDtypeStruct((n_pad, LATENT), jnp.float32),
        ),
        grid=grid,
        in_specs=in_specs,
        out_specs=out_specs,
        compiler_params=pltpu.CompilerParams(dimension_semantics=("parallel",)),
        cost_estimate=cost,
    )(x_flat, eps_p, w1, w2, wfc, w4, w5, w6, bias_pack)

    return recon_flat[:n].reshape(n, 1, hei, wid), mu[:n], logvar[:n]


# ----------------------- one-time parameter preparation ----------------------

def conv2d_toeplitz(w, in_hw):
    """w: (OC,IC,KH,KW) -> M (IC*H*W, OC*OH*OW) s.t. x_flat @ M == Conv2d
    (stride 1, valid) with channel-major flattening; plus (OH, OW)."""
    w = np.asarray(w, np.float32)
    oc, ic, kh, kw = w.shape
    h, wd = in_hw
    oh, ow = h - kh + 1, wd - kw + 1
    m = np.zeros((ic * h * wd, oc * oh * ow), np.float32)
    oy, ox = np.meshgrid(np.arange(oh), np.arange(ow), indexing="ij")
    oy, ox = oy.ravel(), ox.ravel()
    for o in range(oc):
        for i in range(ic):
            for ky in range(kh):
                for kx in range(kw):
                    rows = i * h * wd + (oy + ky) * wd + (ox + kx)
                    cols = o * oh * ow + oy * ow + ox
                    np.add.at(m, (rows, cols), w[o, i, ky, kx])
    return m, (oh, ow)


def convtranspose2x2_toeplitz(w, in_hw):
    """w: (IC,OC,2,2) -> M (IC*H*W, OC*2H*2W) s.t. x_flat @ M ==
    ConvTranspose2d(kernel=2, stride=2) with channel-major flattening."""
    w = np.asarray(w, np.float32)
    ic, oc, kh, kw = w.shape
    h, wd = in_hw
    oh, ow = 2 * h, 2 * wd
    m = np.zeros((ic * h * wd, oc * oh * ow), np.float32)
    iy, ix = np.meshgrid(np.arange(h), np.arange(wd), indexing="ij")
    iy, ix = iy.ravel(), ix.ravel()
    for i in range(ic):
        for o in range(oc):
            for ky in range(kh):
                for kx in range(kw):
                    rows = i * h * wd + iy * wd + ix
                    cols = o * oh * ow + (2 * iy + ky) * ow + (2 * ix + kx)
                    np.add.at(m, (rows, cols), w[i, o, ky, kx])
    return m


def prepare_params(raw, input_shape):
    """Fold PyTorch-layout parameters into kernel-ready matrices (run once)."""
    hei, wid = input_shape
    assert hei % 4 == 0 and wid % 4 == 0, "VAEMultiplex assumes H, W divisible by 4"
    feat = hei * wid // 4
    offs, total, pad_feat = _bias_layout(hei, wid)

    w1, (oh1, ow1) = conv2d_toeplitz(raw["conv1_w"], (hei, wid))     # (HW, 2*oh1*ow1)
    b1 = np.repeat(np.asarray(raw["conv1_b"], np.float32), oh1 * ow1)
    w2, (oh2, ow2) = conv2d_toeplitz(raw["conv2_w"], (oh1, ow1))     # (2*oh1*ow1, feat)
    b2 = np.repeat(np.asarray(raw["conv2_b"], np.float32), oh2 * ow2)
    w2 = np.pad(w2, ((0, 0), (0, pad_feat - feat)))

    # fused fc31 | fc32 (PyTorch Linear stores (out, in))
    wfc = np.concatenate([np.asarray(raw["fc31_w"], np.float32).T,
                          np.asarray(raw["fc32_w"], np.float32).T], axis=1)  # (feat, 2048)
    wfc = np.pad(wfc, ((0, pad_feat - feat), (0, 0)))
    bfc = np.concatenate([np.asarray(raw["fc31_b"], np.float32),
                          np.asarray(raw["fc32_b"], np.float32)])

    w4 = np.asarray(raw["fc4_w"], np.float32).T                      # (1024, feat)
    w4 = np.pad(w4, ((0, 0), (0, pad_feat - feat)))
    b4 = np.asarray(raw["fc4_b"], np.float32)

    w5 = convtranspose2x2_toeplitz(raw["up5_w"], (hei // 4, wid // 4))   # (feat, 4*(H/2)*(W/2))
    w5 = np.pad(w5, ((0, pad_feat - feat), (0, 0)))
    b5 = np.repeat(np.asarray(raw["up5_b"], np.float32), (hei // 2) * (wid // 2))
    w6 = convtranspose2x2_toeplitz(raw["up6_w"], (hei // 2, wid // 2))   # (4*(H/2)*(W/2), HW)
    b6 = np.repeat(np.asarray(raw["up6_b"], np.float32), hei * wid)

    # One packed, lane-aligned bias buffer (fewer DMA descriptors per call).
    bias_pack = np.zeros((1, total), np.float32)
    for idx, vec in enumerate((b1, b2, bfc, b4, b5, b6)):
        off, _ = offs[idx]
        bias_pack[0, off:off + vec.shape[0]] = vec

    weights = tuple(jnp.asarray(m, dtype=jnp.bfloat16)
                    for m in (w1, w2, wfc, w4, w5, w6))
    return {"weights": weights, "bias_pack": jnp.asarray(bias_pack)}


def init_params(key, hei, wid):
    """Raw parameters in the PyTorch layouts of VAEMultiplex."""
    ks = jax.random.split(key, 14)

    def u(k, shape, scale):
        return jax.random.uniform(k, shape, jnp.float32, -scale, scale)

    feat = hei * wid // 4
    return {
        "conv1_w": u(ks[0], (2, 1, hei // 2 + 1, wid // 2 + 1), 0.1),
        "conv1_b": u(ks[1], (2,), 0.1),
        "conv2_w": u(ks[2], (4, 2, hei // 4 + 1, wid // 4 + 1), 0.1),
        "conv2_b": u(ks[3], (4,), 0.1),
        "fc31_w": u(ks[4], (LATENT, feat), 0.05),     # PyTorch Linear: (out, in)
        "fc31_b": u(ks[5], (LATENT,), 0.05),
        "fc32_w": u(ks[6], (LATENT, feat), 0.05),
        "fc32_b": u(ks[7], (LATENT,), 0.05),
        "fc4_w": u(ks[8], (feat, LATENT), 0.05),
        "fc4_b": u(ks[9], (feat,), 0.05),
        "up5_w": u(ks[10], (4, 4, 2, 2), 0.2),        # ConvTranspose2d: (in, out, kh, kw)
        "up5_b": u(ks[11], (4,), 0.2),
        "up6_w": u(ks[12], (4, 1, 2, 2), 0.2),
        "up6_b": u(ks[13], (1,), 0.2),
    }


# ------------------- pure-JAX reference (correctness check) ------------------

def reference_forward(raw, x, eps, input_shape):
    hei, wid = input_shape
    n = x.shape[0]
    dn = ("NCHW", "OIHW", "NCHW")

    h1 = jax.nn.relu(jax.lax.conv_general_dilated(
        x, raw["conv1_w"], (1, 1), "VALID", dimension_numbers=dn)
        + raw["conv1_b"][None, :, None, None])
    h2 = jax.nn.relu(jax.lax.conv_general_dilated(
        h1, raw["conv2_w"], (1, 1), "VALID", dimension_numbers=dn)
        + raw["conv2_b"][None, :, None, None])
    f2 = h2.reshape(n, -1)
    mu = f2 @ raw["fc31_w"].T + raw["fc31_b"]
    logvar = f2 @ raw["fc32_w"].T + raw["fc32_b"]
    z = mu + eps * jnp.exp(0.5 * logvar)
    f4 = jax.nn.relu(z @ raw["fc4_w"].T + raw["fc4_b"])
    h4 = f4.reshape(n, 4, hei // 4, wid // 4)

    def convt(a, w, b):  # PyTorch ConvTranspose2d, weight (IC,OC,2,2), stride 2
        wt = jnp.flip(w, (2, 3)).transpose(1, 0, 2, 3)     # -> (OC, IC, 2, 2)
        y = jax.lax.conv_general_dilated(
            a, wt, (1, 1), [(1, 1), (1, 1)], lhs_dilation=(2, 2),
            dimension_numbers=dn)
        return y + b[None, :, None, None]

    h5 = jax.nn.relu(convt(h4, raw["up5_w"], raw["up5_b"]))
    h6 = jax.nn.relu(convt(h5, raw["up6_w"], raw["up6_b"]))
    return jax.nn.sigmoid(h6), mu, logvar


# ---------------------------------- main -------------------------------------

if __name__ == "__main__":
    hei, wid = 16, 16
    batch = 8            # >= 8 fills the f32 sublanes and amortizes launch/DMA cost

    key = jax.random.PRNGKey(0)
    kp, kx, ke = jax.random.split(key, 3)

    raw = init_params(kp, hei, wid)
    params = prepare_params(raw, (hei, wid))          # one-time transform (bf16 weights)

    x = jax.random.uniform(kx, (batch, 1, hei, wid), jnp.float32)   # NCHW input
    # TODO(synk): torch.randn_like uses PyTorch's global RNG; here eps is a
    # deterministic jax.random.normal sample passed in explicitly.
    eps = jax.random.normal(ke, (batch, LATENT), jnp.float32)

    recon, mu, logvar = vae_multiplex_forward(params, x, eps, input_shape=(hei, wid))
    jax.block_until_ready((recon, mu, logvar))

    assert recon.shape == (batch, 1, hei, wid)
    assert mu.shape == (batch, LATENT) and logvar.shape == (batch, LATENT)

    # Verify the Toeplitz / bf16 / fusion restructuring against a plain-JAX f32 reference.
    r_recon, r_mu, r_logvar = reference_forward(raw, x, eps, (hei, wid))
    np.testing.assert_allclose(np.asarray(mu), np.asarray(r_mu), rtol=1e-2, atol=1e-2)
    np.testing.assert_allclose(np.asarray(logvar), np.asarray(r_logvar), rtol=1e-2, atol=1e-2)
    np.testing.assert_allclose(np.asarray(recon), np.asarray(r_recon), rtol=1e-2, atol=1e-2)

    print("KERNEL_OK")
</pallas_src>

<mosaic_0001>
module attributes {stable_mosaic.version = 11 : i64} {
  func.func @_vae_fused_kernel(%arg0: i32, %arg1: memref<8x256xf32, #tpu.memory_space<vmem>>, %arg2: memref<8x1024xf32, #tpu.memory_space<vmem>>, %arg3: memref<256x128xbf16, #tpu.memory_space<vmem>>, %arg4: memref<128x128xbf16, #tpu.memory_space<vmem>>, %arg5: memref<128x2048xbf16, #tpu.memory_space<vmem>>, %arg6: memref<1024x128xbf16, #tpu.memory_space<vmem>>, %arg7: memref<128x256xbf16, #tpu.memory_space<vmem>>, %arg8: memref<256x256xbf16, #tpu.memory_space<vmem>>, %arg9: memref<1x2944xf32, #tpu.memory_space<vmem>>, %arg10: memref<8x256xf32, #tpu.memory_space<vmem>>, %arg11: memref<8x1024xf32, #tpu.memory_space<vmem>>, %arg12: memref<8x1024xf32, #tpu.memory_space<vmem>>) attributes {dimension_semantics = [#tpu.dimension_semantics<parallel>], iteration_bounds = array<i64: 1>, scalar_prefetch = 0 : i64, scratch_operands = 0 : i64, tpu.core_type = #tpu.core_type<tc>, window_params = [{transform_indices = @transform_0, window_bounds = array<i64: 8, 256>}, {transform_indices = @transform_1, window_bounds = array<i64: 8, 1024>}, {pipeline_mode = #tpu.pipeline_mode<synchronous>, transform_indices = @transform_2, window_bounds = array<i64: 256, 128>}, {pipeline_mode = #tpu.pipeline_mode<synchronous>, transform_indices = @transform_3, window_bounds = array<i64: 128, 128>}, {pipeline_mode = #tpu.pipeline_mode<synchronous>, transform_indices = @transform_4, window_bounds = array<i64: 128, 2048>}, {pipeline_mode = #tpu.pipeline_mode<synchronous>, transform_indices = @transform_5, window_bounds = array<i64: 1024, 128>}, {pipeline_mode = #tpu.pipeline_mode<synchronous>, transform_indices = @transform_6, window_bounds = array<i64: 128, 256>}, {pipeline_mode = #tpu.pipeline_mode<synchronous>, transform_indices = @transform_7, window_bounds = array<i64: 256, 256>}, {pipeline_mode = #tpu.pipeline_mode<synchronous>, transform_indices = @transform_8, window_bounds = array<i64: 1, 2944>}, {transform_indices = @transform_9, window_bounds = array<i64: 8, 256>}, {transform_indices = @transform_10, window_bounds = array<i64: 8, 1024>}, {transform_indices = @transform_11, window_bounds = array<i64: 8, 1024>}]} {
    %c0 = arith.constant 0 : index
    %c0_0 = arith.constant 0 : index
    %0 = vector.load %arg1[%c0, %c0_0] : memref<8x256xf32, #tpu.memory_space<vmem>>, vector<8x256xf32>
    %c0_1 = arith.constant 0 : index
    %c0_2 = arith.constant 0 : index
    %1 = vector.load %arg9[%c0_1, %c0_2] : memref<1x2944xf32, #tpu.memory_space<vmem>>, vector<1x128xf32>
    %2 = arith.truncf %0 : vector<8x256xf32> to vector<8x256xbf16>
    %c0_3 = arith.constant 0 : index
    %c0_4 = arith.constant 0 : index
    %3 = vector.load %arg3[%c0_3, %c0_4] : memref<256x128xbf16, #tpu.memory_space<vmem>>, vector<256x128xbf16>
    %cst = arith.constant dense<0.000000e+00> : vector<8x128xf32>
    %4 = tpu.matmul %2, %3, %cst {dimension_numbers = #tpu.dot_dimension_numbers<[1], [0], [0], [1], [0, 0, 1, 1], [], []>} : vector<8x256xbf16>, vector<256x128xbf16>, vector<8x128xf32> -> vector<8x128xf32>
    %5 = vector.broadcast %1 : vector<1x128xf32> to vector<8x128xf32>
    %6 = arith.addf %4, %5 : vector<8x128xf32>
    %cst_5 = arith.constant 0.000000e+00 : f32
    %7 = vector.broadcast %cst_5 : f32 to vector<8x128xf32>
    %8 = arith.maximumf %6, %7 : vector<8x128xf32>
    %c0_6 = arith.constant 0 : index
    %c128 = arith.constant 128 : index
    %9 = vector.load %arg9[%c0_6, %c128] : memref<1x2944xf32, #tpu.memory_space<vmem>>, vector<1x128xf32>
    %10 = arith.truncf %8 : vector<8x128xf32> to vector<8x128xbf16>
    %c0_7 = arith.constant 0 : index
    %c0_8 = arith.constant 0 : index
    %11 = vector.load %arg4[%c0_7, %c0_8] : memref<128x128xbf16, #tpu.memory_space<vmem>>, vector<128x128xbf16>
    %cst_9 = arith.constant dense<0.000000e+00> : vector<8x128xf32>
    %12 = tpu.matmul %10, %11, %cst_9 {dimension_numbers = #tpu.dot_dimension_numbers<[1], [0], [0], [1], [0, 0, 1, 1], [], []>} : vector<8x128xbf16>, vector<128x128xbf16>, vector<8x128xf32> -> vector<8x128xf32>
    %13 = vector.broadcast %9 : vector<1x128xf32> to vector<8x128xf32>
    %14 = arith.addf %12, %13 : vector<8x128xf32>
    %cst_10 = arith.constant 0.000000e+00 : f32
    %15 = vector.broadcast %cst_10 : f32 to vector<8x128xf32>
    %16 = arith.maximumf %14, %15 : vector<8x128xf32>
    %c0_11 = arith.constant 0 : index
    %c256 = arith.constant 256 : index
    %17 = vector.load %arg9[%c0_11, %c256] : memref<1x2944xf32, #tpu.memory_space<vmem>>, vector<1x2048xf32>
    %18 = arith.truncf %16 : vector<8x128xf32> to vector<8x128xbf16>
    %c0_12 = arith.constant 0 : index
    %c0_13 = arith.constant 0 : index
    %19 = vector.load %arg5[%c0_12, %c0_13] : memref<128x2048xbf16, #tpu.memory_space<vmem>>, vector<128x2048xbf16>
    %cst_14 = arith.constant dense<0.000000e+00> : vector<8x2048xf32>
    %20 = tpu.matmul %18, %19, %cst_14 {dimension_numbers = #tpu.dot_dimension_numbers<[1], [0], [0], [1], [0, 0, 1, 1], [], []>} : vector<8x128xbf16>, vector<128x2048xbf16>, vector<8x2048xf32> -> vector<8x2048xf32>
    %21 = vector.broadcast %17 : vector<1x2048xf32> to vector<8x2048xf32>
    %22 = arith.addf %20, %21 : vector<8x2048xf32>
    %23 = vector.extract_strided_slice %22 {offsets = [0, 0], sizes = [8, 1024], strides = [1, 1]} : vector<8x2048xf32> to vector<8x1024xf32>
    %24 = vector.extract_strided_slice %22 {offsets = [0, 1024], sizes = [8, 1024], strides = [1, 1]} : vector<8x2048xf32> to vector<8x1024xf32>
    %c0_15 = arith.constant 0 : index
    %c0_16 = arith.constant 0 : index
    %25 = vector.load %arg11[%c0_15, %c0_16] : memref<8x1024xf32, #tpu.memory_space<vmem>>, vector<8x1024xf32>
    tpu.vector_store %arg11[%c0_15, %c0_16], %23 {strides = array<i32>} : memref<8x1024xf32, #tpu.memory_space<vmem>>, vector<8x1024xf32>,
    %c0_17 = arith.constant 0 : index
    %c0_18 = arith.constant 0 : index
    %26 = vector.load %arg12[%c0_17, %c0_18] : memref<8x1024xf32, #tpu.memory_space<vmem>>, vector<8x1024xf32>
    tpu.vector_store %arg12[%c0_17, %c0_18], %24 {strides = array<i32>} : memref<8x1024xf32, #tpu.memory_space<vmem>>, vector<8x1024xf32>,
    %c0_19 = arith.constant 0 : index
    %c0_20 = arith.constant 0 : index
    %27 = vector.load %arg2[%c0_19, %c0_20] : memref<8x1024xf32, #tpu.memory_space<vmem>>, vector<8x1024xf32>
    %cst_21 = arith.constant 5.000000e-01 : f32
    %28 = vector.broadcast %cst_21 : f32 to vector<8x1024xf32>
    %29 = arith.mulf %28, %24 : vector<8x1024xf32>
    %30 = math.exp %29 : vector<8x1024xf32>
    %31 = arith.mulf %27, %30 : vector<8x1024xf32>
    %32 = arith.addf %23, %31 : vector<8x1024xf32>
    %c0_22 = arith.constant 0 : index
    %c2304 = arith.constant 2304 : index
    %33 = vector.load %arg9[%c0_22, %c2304] : memref<1x2944xf32, #tpu.memory_space<vmem>>, vector<1x128xf32>
    %34 = arith.truncf %32 : vector<8x1024xf32> to vector<8x1024xbf16>
    %c0_23 = arith.constant 0 : index
    %c0_24 = arith.constant 0 : index
    %35 = vector.load %arg6[%c0_23, %c0_24] : memref<1024x128xbf16, #tpu.memory_space<vmem>>, vector<1024x128xbf16>
    %cst_25 = arith.constant dense<0.000000e+00> : vector<8x128xf32>
    %36 = tpu.matmul %34, %35, %cst_25 {dimension_numbers = #tpu.dot_dimension_numbers<[1], [0], [0], [1], [0, 0, 1, 1], [], []>} : vector<8x1024xbf16>, vector<1024x128xbf16>, vector<8x128xf32> -> vector<8x128xf32>
    %37 = vector.broadcast %33 : vector<1x128xf32> to vector<8x128xf32>
    %38 = arith.addf %36, %37 : vector<8x128xf32>
    %cst_26 = arith.constant 0.000000e+00 : f32
    %39 = vector.broadcast %cst_26 : f32 to vector<8x128xf32>
    %40 = arith.maximumf %38, %39 : vector<8x128xf32>
    %c0_27 = arith.constant 0 : index
    %c2432 = arith.constant 2432 : index
    %41 = vector.load %arg9[%c0_27, %c2432] : memref<1x2944xf32, #tpu.memory_space<vmem>>, vector<1x256xf32>
    %42 = arith.truncf %40 : vector<8x128xf32> to vector<8x128xbf16>
    %c0_28 = arith.constant 0 : index
    %c0_29 = arith.constant 0 : index
    %43 = vector.load %arg7[%c0_28, %c0_29] : memref<128x256xbf16, #tpu.memory_space<vmem>>, vector<128x256xbf16>
    %cst_30 = arith.constant dense<0.000000e+00> : vector<8x256xf32>
    %44 = tpu.matmul %42, %43, %cst_30 {dimension_numbers = #tpu.dot_dimension_numbers<[1], [0], [0], [1], [0, 0, 1, 1], [], []>} : vector<8x128xbf16>, vector<128x256xbf16>, vector<8x256xf32> -> vector<8x256xf32>
    %45 = vector.broadcast %41 : vector<1x256xf32> to vector<8x256xf32>
    %46 = arith.addf %44, %45 : vector<8x256xf32>
    %cst_31 = arith.constant 0.000000e+00 : f32
    %47 = vector.broadcast %cst_31 : f32 to vector<8x256xf32>
    %48 = arith.maximumf %46, %47 : vector<8x256xf32>
    %c0_32 = arith.constant 0 : index
    %c2688 = arith.constant 2688 : index
    %49 = vector.load %arg9[%c0_32, %c2688] : memref<1x2944xf32, #tpu.memory_space<vmem>>, vector<1x256xf32>
    %50 = arith.truncf %48 : vector<8x256xf32> to vector<8x256xbf16>
    %c0_33 = arith.constant 0 : index
    %c0_34 = arith.constant 0 : index
    %51 = vector.load %arg8[%c0_33, %c0_34] : memref<256x256xbf16, #tpu.memory_space<vmem>>, vector<256x256xbf16>
    %cst_35 = arith.constant dense<0.000000e+00> : vector<8x256xf32>
    %52 = tpu.matmul %50, %51, %cst_35 {dimension_numbers = #tpu.dot_dimension_numbers<[1], [0], [0], [1], [0, 0, 1, 1], [], []>} : vector<8x256xbf16>, vector<256x256xbf16>, vector<8x256xf32> -> vector<8x256xf32>
    %53 = vector.broadcast %49 : vector<1x256xf32> to vector<8x256xf32>
    %54 = arith.addf %52, %53 : vector<8x256xf32>
    %cst_36 = arith.constant 0.000000e+00 : f32
    %55 = vector.broadcast %cst_36 : f32 to vector<8x256xf32>
    %56 = arith.maximumf %54, %55 : vector<8x256xf32>
    %57 = arith.negf %56 : vector<8x256xf32>
    %58 = math.exp %57 : vector<8x256xf32>
    %cst_37 = arith.constant 1.000000e+00 : f32
    %59 = vector.broadcast %cst_37 : f32 to vector<8x256xf32>
    %60 = arith.addf %59, %58 : vector<8x256xf32>
    %61 = arith.divf %59, %60 : vector<8x256xf32>
    %c0_38 = arith.constant 0 : index
    %c0_39 = arith.constant 0 : index
    %62 = vector.load %arg10[%c0_38, %c0_39] : memref<8x256xf32, #tpu.memory_space<vmem>>, vector<8x256xf32>
    tpu.vector_store %arg10[%c0_38, %c0_39], %61 {strides = array<i32>} : memref<8x256xf32, #tpu.memory_space<vmem>>, vector<8x256xf32>,
    return
  }
  func.func @transform_0(%arg0: i32) -> (i32, i32) {
    %c0_i32 = arith.constant 0 : i32
    %c0_i32_0 = arith.constant 0 : i32
    return %arg0, %c0_i32 : i32, i32
  }
  func.func @transform_1(%arg0: i32) -> (i32, i32) {
    %c0_i32 = arith.constant 0 : i32
    %c0_i32_0 = arith.constant 0 : i32
    return %arg0, %c0_i32 : i32, i32
  }
  func.func @transform_2(%arg0: i32) -> (i32, i32) {
    %c0_i32 = arith.constant 0 : i32
    %c0_i32_0 = arith.constant 0 : i32
    %c0_i32_1 = arith.constant 0 : i32
    return %c0_i32, %c0_i32_0 : i32, i32
  }
  func.func @transform_3(%arg0: i32) -> (i32, i32) {
    %c0_i32 = arith.constant 0 : i32
    %c0_i32_0 = arith.constant 0 : i32
    %c0_i32_1 = arith.constant 0 : i32
    return %c0_i32, %c0_i32_0 : i32, i32
  }
  func.func @transform_4(%arg0: i32) -> (i32, i32) {
    %c0_i32 = arith.constant 0 : i32
    %c0_i32_0 = arith.constant 0 : i32
    %c0_i32_1 = arith.constant 0 : i32
    return %c0_i32, %c0_i32_0 : i32, i32
  }
  func.func @transform_5(%arg0: i32) -> (i32, i32) {
    %c0_i32 = arith.constant 0 : i32
    %c0_i32_0 = arith.constant 0 : i32
    %c0_i32_1 = arith.constant 0 : i32
    return %c0_i32, %c0_i32_0 : i32, i32
  }
  func.func @transform_6(%arg0: i32) -> (i32, i32) {
    %c0_i32 = arith.constant 0 : i32
    %c0_i32_0 = arith.constant 0 : i32
    %c0_i32_1 = arith.constant 0 : i32
    return %c0_i32, %c0_i32_0 : i32, i32
  }
  func.func @transform_7(%arg0: i32) -> (i32, i32) {
    %c0_i32 = arith.constant 0 : i32
    %c0_i32_0 = arith.constant 0 : i32
    %c0_i32_1 = arith.constant 0 : i32
    return %c0_i32, %c0_i32_0 : i32, i32
  }
  func.func @transform_8(%arg0: i32) -> (i32, i32) {
    %c0_i32 = arith.constant 0 : i32
    %c0_i32_0 = arith.constant 0 : i32
    %c0_i32_1 = arith.constant 0 : i32
    return %c0_i32, %c0_i32_0 : i32, i32
  }
  func.func @transform_9(%arg0: i32) -> (i32, i32) {
    %c0_i32 = arith.constant 0 : i32
    %c0_i32_0 = arith.constant 0 : i32
    return %arg0, %c0_i32 : i32, i32
  }
  func.func @transform_10(%arg0: i32) -> (i32, i32) {
    %c0_i32 = arith.constant 0 : i32
    %c0_i32_0 = arith.constant 0 : i32
    return %arg0, %c0_i32 : i32, i32
  }
  func.func @transform_11(%arg0: i32) -> (i32, i32) {
    %c0_i32 = arith.constant 0 : i32
    %c0_i32_0 = arith.constant 0 : i32
    return %arg0, %c0_i32 : i32, i32
  }
}

</mosaic_0001>

<llo_original>
// kernel: vae_multiplex_forward.1
$region0: #{vae_multiplex_forward.1}
  #allocation0 [shape = 'u32[]', space=smem, size = 0x4, offset = 0x4, fixed_abs, tag = 'smem constant byte address 0x4 - core index']
  #allocation1 [shape = 'u32[144,128]{1,0:T(1,128)}', space=vmem, size = 0x12000, scoped, tag = 'internal scratch']
  %s0 = inlined_call_operand.vmem [shape: f32[8,256], index: 0, kind: input, shape index: {}]
  %s1 = inlined_call_operand.hbm [shape: f32[8,1024], index: 1, kind: input, shape index: {}]
  %s2 = inlined_call_operand.vmem [shape: bf16[256,128], index: 2, kind: input, shape index: {}]
  %s3 = inlined_call_operand.hbm [shape: bf16[128,128], index: 3, kind: input, shape index: {}]
  %s4 = inlined_call_operand.hbm [shape: bf16[128,2048], index: 4, kind: input, shape index: {}]
  %s5 = inlined_call_operand.hbm [shape: bf16[1024,128], index: 5, kind: input, shape index: {}]
  %s6 = inlined_call_operand.hbm [shape: bf16[128,256], index: 6, kind: input, shape index: {}]
  %s7 = inlined_call_operand.hbm [shape: bf16[256,256], index: 7, kind: input, shape index: {}]
  %s8 = inlined_call_operand.hbm [shape: f32[1,2944], index: 8, kind: input, shape index: {}]
  %s9 = inlined_call_operand.vmem [shape: f32[8,256], index: 9, kind: output, shape index: {0}]
  %s10 = inlined_call_operand.hbm [shape: f32[8,1024], index: 10, kind: output, shape index: {1}]
  %s11 = inlined_call_operand.hbm [shape: f32[8,1024], index: 11, kind: output, shape index: {2}]
  %12 = xla_tuple %s9, %s10, %s11
  %s13 = sld [smem:[#allocation0]]
  $region90: #{vae_multiplex_forward.1} parent=0
    _
  %s15 = ssub.s32 1, %s13
  %s16 = scalar_select 0, %s15, %s13
  $region1: #{vae_multiplex_forward.1} parent=0
    #allocation2 [shape = 'u8[32768]{0}', space=vmem, size = 0x8000, scoped, tag = 'input window, operand 1, single buffered']
    #allocation3 [shape = 's32[1]{0}', space=sflag, size = 0x4, scoped, tag = 'scoped memory for vae_multiplex_forward.1']
    #allocation4 [shape = 's32[1]{0}', space=sflag, size = 0x4, scoped, tag = 'scoped memory for vae_multiplex_forward.1']
    #allocation5 [shape = 'u8[32768]{0}', space=vmem, size = 0x8000, scoped, tag = 'input window, operand 3, single buffered']
    #allocation6 [shape = 's32[1]{0}', space=sflag, size = 0x4, scoped, tag = 'scoped memory for vae_multiplex_forward.1']
    #allocation7 [shape = 'u8[524288]{0}', space=vmem, size = 0x80000, scoped, tag = 'input window, operand 4, single buffered']
    #allocation8 [shape = 'u8[262144]{0}', space=vmem, size = 0x40000, scoped, tag = 'input window, operand 5, single buffered']
    #allocation9 [shape = 's32[1]{0}', space=sflag, size = 0x4, scoped, tag = 'scoped memory for vae_multiplex_forward.1']
    #allocation10 [shape = 'u8[65536]{0}', space=vmem, size = 0x10000, scoped, tag = 'input window, operand 6, single buffered']
    #allocation11 [shape = 'u8[131072]{0}', space=vmem, size = 0x20000, scoped, tag = 'input window, operand 7, single buffered']
    #allocation12 [shape = 's32[1]{0}', space=sflag, size = 0x4, scoped, tag = 'scoped memory for vae_multiplex_forward.1']
    #allocation13 [shape = 'u8[11776]{0}', space=vmem, size = 0x3000, scoped, tag = 'input window, operand 8, single buffered']
    #allocation14 [shape = 'u8[32768]{0}', space=vmem, size = 0x8000, scoped, tag = 'output window, operand 1, single buffered']
    #allocation15 [shape = 'u8[32768]{0}', space=vmem, size = 0x8000, scoped, tag = 'output window, operand 2, single buffered']
    #allocation16 [shape = 's32[1]{0}', space=sflag, size = 0x4, scoped, tag = 'scoped memory for vae_multiplex_forward.1']
    %17 = vsyncpa [#allocation3], 0
    %18 = vsyncpa [#allocation6], 0
    %19 = vsyncpa [#allocation9], 0
    %20 = vsyncpa [#allocation12], 0
    %21 = vsyncpa [#allocation4], 0
    %22 = vsyncpa [#allocation16], 0
    // Predicated region
    $region2: #{vae_multiplex_forward.1} parent=1 // pred_check
      _
    $region3: #{vae_multiplex_forward.1} parent=1 // pred_check_branch
      %24 = sbr.rel (0) target = $region5
    $region4: #{vae_multiplex_forward.1} parent=1 // pred_region
      _
    $region5: #{vae_multiplex_forward.1} parent=1 // pred_fallthru
      _
    // Predicated region
    $region6: #{vae_multiplex_forward.1} parent=1 // pred_check
      _
    $region7: #{vae_multiplex_forward.1} parent=1 // pred_check_branch
      %26 = sbr.rel (0) target = $region9
    $region8: #{vae_multiplex_forward.1} parent=1 // pred_region
      %s28 = ssub.s32 1024, 1024
      %29 = vsyncadd [#allocation3], %s28
      %s31 = sshll.u32 [#allocation2], 4
      %s32 = int_to_ptr.vmem [resolvable:$true] %s31
      %34 = dma.hbm_to_vmem [thread:$0]  %s1, 1024, %s32, [#allocation3]
    $region9: #{vae_multiplex_forward.1} parent=1 // pred_fallthru
      _
    // Predicated region
    $region10: #{vae_multiplex_forward.1} parent=1 // pred_check
      _
    $region11: #{vae_multiplex_forward.1} parent=1 // pred_check_branch
      %36 = sbr.rel (0) target = $region13
    $region12: #{vae_multiplex_forward.1} parent=1 // pred_region
      _
    $region13: #{vae_multiplex_forward.1} parent=1 // pred_fallthru
      _
    // Predicated region
    $region14: #{vae_multiplex_forward.1} parent=1 // pred_check
      _
    $region15: #{vae_multiplex_forward.1} parent=1 // pred_check_branch
      %38 = sbr.rel (0) target = $region17
    $region16: #{vae_multiplex_forward.1} parent=1 // pred_region
      %s40 = ssub.s32 1024, 1024
      %41 = vsyncadd [#allocation6], %s40
      %s42 = sshll.u32 [#allocation5], 4
      %s43 = int_to_ptr.vmem [resolvable:$true] %s42
      %48 = dma.hbm_to_vmem [thread:$0]  %s3, 1024, %s43, [#allocation6], 64, 64, 4
    $region17: #{vae_multiplex_forward.1} parent=1 // pred_fallthru
      _
    // Predicated region
    $region18: #{vae_multiplex_forward.1} parent=1 // pred_check
      _
    $region19: #{vae_multiplex_forward.1} parent=1 // pred_check_branch
      %50 = sbr.rel (0) target = $region21
    $region20: #{vae_multiplex_forward.1} parent=1 // pred_region
      %s52 = ssub.s32 16384, 16384
      %53 = vsyncadd [#allocation6], %s52
      %s54 = sshll.u32 [#allocation7], 4
      %s55 = int_to_ptr.vmem [resolvable:$true] %s54
      %60 = dma.hbm_to_vmem [thread:$0]  %s4, 16384, %s55, [#allocation6], 1024, 1024, 64
    $region21: #{vae_multiplex_forward.1} parent=1 // pred_fallthru
      _
    // Predicated region
    $region22: #{vae_multiplex_forward.1} parent=1 // pred_check
      _
    $region23: #{vae_multiplex_forward.1} parent=1 // pred_check_branch
      %62 = sbr.rel (0) target = $region25
    $region24: #{vae_multiplex_forward.1} parent=1 // pred_region
      %s64 = ssub.s32 8192, 8192
      %65 = vsyncadd [#allocation9], %s64
      %s66 = sshll.u32 [#allocation8], 4
      %s67 = int_to_ptr.vmem [resolvable:$true] %s66
      %72 = dma.hbm_to_vmem [thread:$0]  %s5, 8192, %s67, [#allocation9], 64, 64, 4
    $region25: #{vae_multiplex_forward.1} parent=1 // pred_fallthru
      _
    // Predicated region
    $region26: #{vae_multiplex_forward.1} parent=1 // pred_check
      _
    $region27: #{vae_multiplex_forward.1} parent=1 // pred_check_branch
      %74 = sbr.rel (0) target = $region29
    $region28: #{vae_multiplex_forward.1} parent=1 // pred_region
      %s76 = ssub.s32 2048, 2048
      %77 = vsyncadd [#allocation9], %s76
      %s78 = sshll.u32 [#allocation10], 4
      %s79 = int_to_ptr.vmem [resolvable:$true] %s78
      %84 = dma.hbm_to_vmem [thread:$0]  %s6, 2048, %s79, [#allocation9], 128, 128, 8
    $region29: #{vae_multiplex_forward.1} parent=1 // pred_fallthru
      _
    // Predicated region
    $region30: #{vae_multiplex_forward.1} parent=1 // pred_check
      _
    $region31: #{vae_multiplex_forward.1} parent=1 // pred_check_branch
      %86 = sbr.rel (0) target = $region33
    $region32: #{vae_multiplex_forward.1} parent=1 // pred_region
      %s88 = ssub.s32 4096, 4096
      %89 = vsyncadd [#allocation12], %s88
      %s90 = sshll.u32 [#allocation11], 4
      %s91 = int_to_ptr.vmem [resolvable:$true] %s90
      %96 = dma.hbm_to_vmem [thread:$0]  %s7, 4096, %s91, [#allocation12], 128, 128, 8
    $region33: #{vae_multiplex_forward.1} parent=1 // pred_fallthru
      _
    // Predicated region
    $region34: #{vae_multiplex_forward.1} parent=1 // pred_check
      _
    $region35: #{vae_multiplex_forward.1} parent=1 // pred_check_branch
      %98 = sbr.rel (0) target = $region37
    $region36: #{vae_multiplex_forward.1} parent=1 // pred_region
      %s100 = ssub.s32 368, 368
      %101 = vsyncadd [#allocation12], %s100
      %s103 = sshll.u32 [#allocation13], 4
      %s104 = int_to_ptr.vmem [resolvable:$true] %s103
      %106 = dma.hbm_to_vmem [thread:$0]  %s8, 368, %s104, [#allocation12]
    $region37: #{vae_multiplex_forward.1} parent=1 // pred_fallthru
      _
    // Predicated region
    $region38: #{vae_multiplex_forward.1} parent=1 // pred_check
      _
    $region39: #{vae_multiplex_forward.1} parent=1 // pred_check_branch
      %108 = sbr.rel (0) target = $region41
    $region40: #{vae_multiplex_forward.1} parent=1 // pred_region
      %109 = dma.done [#allocation3], 1024
    $region41: #{vae_multiplex_forward.1} parent=1 // pred_fallthru
      _
    // Predicated region
    $region42: #{vae_multiplex_forward.1} parent=1 // pred_check
      _
    $region43: #{vae_multiplex_forward.1} parent=1 // pred_check_branch
      %111 = sbr.rel (0) target = $region45
    $region44: #{vae_multiplex_forward.1} parent=1 // pred_region
      %112 = dma.done [#allocation6], 1024
    $region45: #{vae_multiplex_forward.1} parent=1 // pred_fallthru
      _
    // Predicated region
    $region46: #{vae_multiplex_forward.1} parent=1 // pred_check
      _
    $region47: #{vae_multiplex_forward.1} parent=1 // pred_check_branch
      %114 = sbr.rel (0) target = $region49
    $region48: #{vae_multiplex_forward.1} parent=1 // pred_region
      %115 = dma.done [#allocation6], 16384
    $region49: #{vae_multiplex_forward.1} parent=1 // pred_fallthru
      _
    // Predicated region
    $region50: #{vae_multiplex_forward.1} parent=1 // pred_check
      _
    $region51: #{vae_multiplex_forward.1} parent=1 // pred_check_branch
      %117 = sbr.rel (0) target = $region53
    $region52: #{vae_multiplex_forward.1} parent=1 // pred_region
      %118 = dma.done [#allocation9], 8192
    $region53: #{vae_multiplex_forward.1} parent=1 // pred_fallthru
      _
    // Predicated region
    $region54: #{vae_multiplex_forward.1} parent=1 // pred_check
      _
    $region55: #{vae_multiplex_forward.1} parent=1 // pred_check_branch
      %120 = sbr.rel (0) target = $region57
    $region56: #{vae_multiplex_forward.1} parent=1 // pred_region
      %121 = dma.done [#allocation9], 2048
    $region57: #{vae_multiplex_forward.1} parent=1 // pred_fallthru
      _
    // Predicated region
    $region58: #{vae_multiplex_forward.1} parent=1 // pred_check
      _
    $region59: #{vae_multiplex_forward.1} parent=1 // pred_check_branch
      %123 = sbr.rel (0) target = $region61
    $region60: #{vae_multiplex_forward.1} parent=1 // pred_region
      %124 = dma.done [#allocation12], 4096
    $region61: #{vae_multiplex_forward.1} parent=1 // pred_fallthru
      _
    // Predicated region
    $region62: #{vae_multiplex_forward.1} parent=1 // pred_check
      _
    $region63: #{vae_multiplex_forward.1} parent=1 // pred_check_branch
      %126 = sbr.rel (0) target = $region65
    $region64: #{vae_multiplex_forward.1} parent=1 // pred_region
      %127 = dma.done [#allocation12], 368
    $region65: #{vae_multiplex_forward.1} parent=1 // pred_fallthru
      _
    %v129 = vld [vmem:[%s0] sm:$0xff]
    %v130 = vld [vmem:[%s0 + $0x8] sm:$0xff]
    %v131 = vld [vmem:[#allocation13] sm:$0x1]
    %v132 = vpack.c.bf16 %v129, %v129
    %v133 = vpack.c.bf16 %v130, %v130
    %v134 = vld [vmem:[%s2] sm:$0xf]
    %v135 = vld [vmem:[%s2 + $0x4] sm:$0xf]
    %v136 = vld [vmem:[%s2 + $0x8] sm:$0xf]
    %v137 = vld [vmem:[%s2 + $0xc] sm:$0xf]
    %v138 = vld [vmem:[%s2 + $0x10] sm:$0xf]
    %v139 = vld [vmem:[%s2 + $0x14] sm:$0xf]
    %v140 = vld [vmem:[%s2 + $0x18] sm:$0xf]
    %v141 = vld [vmem:[%s2 + $0x1c] sm:$0xf]
    %v142 = vld [vmem:[%s2 + $0x20] sm:$0xf]
    %v143 = vld [vmem:[%s2 + $0x24] sm:$0xf]
    %v144 = vld [vmem:[%s2 + $0x28] sm:$0xf]
    %v145 = vld [vmem:[%s2 + $0x2c] sm:$0xf]
    %v146 = vld [vmem:[%s2 + $0x30] sm:$0xf]
    %v147 = vld [vmem:[%s2 + $0x34] sm:$0xf]
    %v148 = vld [vmem:[%s2 + $0x38] sm:$0xf]
    %v149 = vld [vmem:[%s2 + $0x3c] sm:$0xf]
    %v150 = vld [vmem:[%s2 + $0x40] sm:$0xf]
    %v151 = vld [vmem:[%s2 + $0x44] sm:$0xf]
    %v152 = vld [vmem:[%s2 + $0x48] sm:$0xf]
    %v153 = vld [vmem:[%s2 + $0x4c] sm:$0xf]
    %v154 = vld [vmem:[%s2 + $0x50] sm:$0xf]
    %v155 = vld [vmem:[%s2 + $0x54] sm:$0xf]
    %v156 = vld [vmem:[%s2 + $0x58] sm:$0xf]
    %v157 = vld [vmem:[%s2 + $0x5c] sm:$0xf]
    %v158 = vld [vmem:[%s2 + $0x60] sm:$0xf]
    %v159 = vld [vmem:[%s2 + $0x64] sm:$0xf]
    %v160 = vld [vmem:[%s2 + $0x68] sm:$0xf]
    %v161 = vld [vmem:[%s2 + $0x6c] sm:$0xf]
    %v162 = vld [vmem:[%s2 + $0x70] sm:$0xf]
    %v163 = vld [vmem:[%s2 + $0x74] sm:$0xf]
    %v164 = vld [vmem:[%s2 + $0x78] sm:$0xf]
    %v165 = vld [vmem:[%s2 + $0x7c] sm:$0xf]
    %v167 = vlaneseq
    %v168 = vshrl.u32 %v167, 7
    %v169 = vsub.s32 0, %v168
    %v170 = vrot.slane %v131, %v169
    %v204 = vunpack.c.l.b16 %v134
    %v205 = vunpack.c.l.b16 %v135
    %v206 = vunpack.c.l.b16 %v136
    %v207 = vunpack.c.l.b16 %v137
    %v208 = vunpack.c.l.b16 %v138
    %v209 = vunpack.c.l.b16 %v139
    %v210 = vunpack.c.l.b16 %v140
    %v211 = vunpack.c.l.b16 %v141
    %v212 = vunpack.c.l.b16 %v142
    %v213 = vunpack.c.l.b16 %v143
    %v214 = vunpack.c.l.b16 %v144
    %v215 = vunpack.c.l.b16 %v145
    %v216 = vunpack.c.l.b16 %v146
    %v217 = vunpack.c.l.b16 %v147
    %v218 = vunpack.c.l.b16 %v148
    %v219 = vunpack.c.l.b16 %v149
    %v220 = vunpack.c.l.b16 %v150
    %v221 = vunpack.c.l.b16 %v151
    %v222 = vunpack.c.l.b16 %v152
    %v223 = vunpack.c.l.b16 %v153
    %v224 = vunpack.c.l.b16 %v154
    %v225 = vunpack.c.l.b16 %v155
    %v226 = vunpack.c.l.b16 %v156
    %v227 = vunpack.c.l.b16 %v157
    %v228 = vunpack.c.l.b16 %v158
    %v229 = vunpack.c.l.b16 %v159
    %v230 = vunpack.c.l.b16 %v160
    %v231 = vunpack.c.l.b16 %v161
    %v232 = vunpack.c.l.b16 %v162
    %v233 = vunpack.c.l.b16 %v163
    %v234 = vunpack.c.l.b16 %v164
    %v235 = vunpack.c.l.b16 %v165
    %v236 = vpack.c.b16 %v205, %v204
    %v237 = vpack.c.b16 %v207, %v206
    %v238 = vpack.c.b16 %v209, %v208
    %v239 = vpack.c.b16 %v211, %v210
    %v240 = vpack.c.b16 %v213, %v212
    %v241 = vpack.c.b16 %v215, %v214
    %v242 = vpack.c.b16 %v217, %v216
    %v243 = vpack.c.b16 %v219, %v218
    %v244 = vpack.c.b16 %v221, %v220
    %v245 = vpack.c.b16 %v223, %v222
    %v246 = vpack.c.b16 %v225, %v224
    %v247 = vpack.c.b16 %v227, %v226
    %v248 = vpack.c.b16 %v229, %v228
    %v249 = vpack.c.b16 %v231, %v230
    %v250 = vpack.c.b16 %v233, %v232
    %v251 = vpack.c.b16 %v235, %v234
    %268 = vmatprep.subr.bf16.mxu0 0
    %269 = vmatpush1.bf16.msra.mxu0 %v236
    %270 = vmatprep.subr.bf16.mxu0 0
    %271 = vmatpush1.bf16.msra.mxu0 %v237
    %272 = vmatprep.subr.bf16.mxu0 0
    %273 = vmatpush1.bf16.msra.mxu0 %v238
    %274 = vmatprep.subr.bf16.mxu0 0
    %275 = vmatpush1.bf16.msra.mxu0 %v239
    %276 = vmatprep.subr.bf16.mxu0 0
    %277 = vmatpush1.bf16.msra.mxu0 %v240
    %278 = vmatprep.subr.bf16.mxu0 0
    %279 = vmatpush1.bf16.msra.mxu0 %v241
    %280 = vmatprep.subr.bf16.mxu0 0
    %281 = vmatpush1.bf16.msra.mxu0 %v242
    %282 = vmatprep.subr.bf16.mxu0 0
    %283 = vmatpush1.bf16.msra.mxu0 %v243
    %284 = vmatprep.subr.bf16.mxu0 0
    %285 = vmatpush1.bf16.msra.mxu0 %v244
    %286 = vmatprep.subr.bf16.mxu0 0
    %287 = vmatpush1.bf16.msra.mxu0 %v245
    %288 = vmatprep.subr.bf16.mxu0 0
    %289 = vmatpush1.bf16.msra.mxu0 %v246
    %290 = vmatprep.subr.bf16.mxu0 0
    %291 = vmatpush1.bf16.msra.mxu0 %v247
    %292 = vmatprep.subr.bf16.mxu0 0
    %293 = vmatpush1.bf16.msra.mxu0 %v248
    %294 = vmatprep.subr.bf16.mxu0 0
    %295 = vmatpush1.bf16.msra.mxu0 %v249
    %296 = vmatprep.subr.bf16.mxu0 0
    %297 = vmatpush1.bf16.msra.mxu0 %v250
    %298 = vmatprep.subr.bf16.mxu0 0
    %299 = vmatpush1.bf16.msra.mxu0 %v251
    %300 = vmatprep.mubr.bf16.mxu0 %v133
    %301 = vmatmul.mubr.bf16.gmra.mrb[0].mxu0 %v132
    %v302 = vpop.f32.mrb[0].mxu0
    %v303 = vadd.f32 %v170, %v302
    %v304 = vpop.f32.mrb[0].mxu0
    %v305 = vpop.f32.mrb[0].mxu0
    %v306 = vpop.f32.mrb[0].mxu0
    %307 = vdwg.mxu0
    %v308 = vmax.f32 %v303, 0.0
    %v309 = vld [vmem:[#allocation13 + $0x1] sm:$0x1]
    %v310 = vpack.c.bf16 %v308, %v308
    %v311 = vld [vmem:[#allocation5] sm:$0xf]
    %v312 = vld [vmem:[#allocation5 + $0x4] sm:$0xf]
    %v313 = vld [vmem:[#allocation5 + $0x8] sm:$0xf]
    %v314 = vld [vmem:[#allocation5 + $0xc] sm:$0xf]
    %v315 = vld [vmem:[#allocation5 + $0x10] sm:$0xf]
    %v316 = vld [vmem:[#allocation5 + $0x14] sm:$0xf]
    %v317 = vld [vmem:[#allocation5 + $0x18] sm:$0xf]
    %v318 = vld [vmem:[#allocation5 + $0x1c] sm:$0xf]
    %v319 = vld [vmem:[#allocation5 + $0x20] sm:$0xf]
    %v320 = vld [vmem:[#allocation5 + $0x24] sm:$0xf]
    %v321 = vld [vmem:[#allocation5 + $0x28] sm:$0xf]
    %v322 = vld [vmem:[#allocation5 + $0x2c] sm:$0xf]
    %v323 = vld [vmem:[#allocation5 + $0x30] sm:$0xf]
    %v324 = vld [vmem:[#allocation5 + $0x34] sm:$0xf]
    %v325 = vld [vmem:[#allocation5 + $0x38] sm:$0xf]
    %v326 = vld [vmem:[#allocation5 + $0x3c] sm:$0xf]
    %v328 = vlaneseq
    %v329 = vshrl.u32 %v328, 7
    %v330 = vsub.s32 0, %v329
    %v331 = vrot.slane %v309, %v330
    %v349 = vunpack.c.l.b16 %v311
    %v350 = vunpack.c.l.b16 %v312
    %v351 = vunpack.c.l.b16 %v313
    %v352 = vunpack.c.l.b16 %v314
    %v353 = vunpack.c.l.b16 %v315
    %v354 = vunpack.c.l.b16 %v316
    %v355 = vunpack.c.l.b16 %v317
    %v356 = vunpack.c.l.b16 %v318
    %v357 = vunpack.c.l.b16 %v319
    %v358 = vunpack.c.l.b16 %v320
    %v359 = vunpack.c.l.b16 %v321
    %v360 = vunpack.c.l.b16 %v322
    %v361 = vunpack.c.l.b16 %v323
    %v362 = vunpack.c.l.b16 %v324
    %v363 = vunpack.c.l.b16 %v325
    %v364 = vunpack.c.l.b16 %v326
    %v365 = vpack.c.b16 %v350, %v349
    %v366 = vpack.c.b16 %v352, %v351
    %v367 = vpack.c.b16 %v354, %v353
    %v368 = vpack.c.b16 %v356, %v355
    %v369 = vpack.c.b16 %v358, %v357
    %v370 = vpack.c.b16 %v360, %v359
    %v371 = vpack.c.b16 %v362, %v361
    %v372 = vpack.c.b16 %v364, %v363
    %381 = vmatprep.subr.bf16.mxu0 0
    %382 = vmatpush1.bf16.msra.mxu0 %v365
    %383 = vmatprep.subr.bf16.mxu0 0
    %384 = vmatpush1.bf16.msra.mxu0 %v366
    %385 = vmatprep.subr.bf16.mxu0 0
    %386 = vmatpush1.bf16.msra.mxu0 %v367
    %387 = vmatprep.subr.bf16.mxu0 0
    %388 = vmatpush1.bf16.msra.mxu0 %v368
    %389 = vmatprep.subr.bf16.mxu0 0
    %390 = vmatpush1.bf16.msra.mxu0 %v369
    %391 = vmatprep.subr.bf16.mxu0 0
    %392 = vmatpush1.bf16.msra.mxu0 %v370
    %393 = vmatprep.subr.bf16.mxu0 0
    %394 = vmatpush1.bf16.msra.mxu0 %v371
    %395 = vmatprep.subr.bf16.mxu0 0
    %396 = vmatpush1.bf16.msra.mxu0 %v372
    %397 = vmatprep.subr.bf16.mxu0 0
    %398 = vmatpush1.bf16.msra.mxu0 0
    %399 = vmatprep.subr.bf16.mxu0 0
    %400 = vmatpush1.bf16.msra.mxu0 0
    %401 = vmatprep.subr.bf16.mxu0 0
    %402 = vmatpush1.bf16.msra.mxu0 0
    %403 = vmatprep.subr.bf16.mxu0 0
    %404 = vmatpush1.bf16.msra.mxu0 0
    %405 = vmatprep.subr.bf16.mxu0 0
    %406 = vmatpush1.bf16.msra.mxu0 0
    %407 = vmatprep.subr.bf16.mxu0 0
    %408 = vmatpush1.bf16.msra.mxu0 0
    %409 = vmatprep.subr.bf16.mxu0 0
    %410 = vmatpush1.bf16.msra.mxu0 0
    %411 = vmatprep.subr.bf16.mxu0 0
    %412 = vmatpush1.bf16.msra.mxu0 0
    %413 = vmatprep.mubr.bf16.mxu0 0
    %414 = vmatmul.mubr.bf16.gmra.mrb[0].mxu0 %v310
    %v415 = vpop.f32.mrb[0].mxu0
    %v416 = vadd.f32 %v331, %v415
    %v417 = vpop.f32.mrb[0].mxu0
    %v418 = vpop.f32.mrb[0].mxu0
    %v419 = vpop.f32.mrb[0].mxu0
    %420 = vdwg.mxu0
    %v421 = vmax.f32 %v416, 0.0
    %v422 = vld [vmem:[#allocation13 + $0x2] sm:$0xff]
    %v423 = vld [vmem:[#allocation13 + $0xa] sm:$0xff]
    %v424 = vpack.c.bf16 %v421, %v421
    %v425 = vld [vmem:[#allocation7] sm:$0xff]
    %v426 = vld [vmem:[#allocation7 + $0x8] sm:$0xff]
    %v427 = vld [vmem:[#allocation7 + $0x10] sm:$0xff]
    %v428 = vld [vmem:[#allocation7 + $0x18] sm:$0xff]
    %v429 = vld [vmem:[#allocation7 + $0x20] sm:$0xff]
    %v430 = vld [vmem:[#allocation7 + $0x28] sm:$0xff]
    %v431 = vld [vmem:[#allocation7 + $0x30] sm:$0xff]
    %v432 = vld [vmem:[#allocation7 + $0x38] sm:$0xff]
    %v433 = vld [vmem:[#allocation7 + $0x40] sm:$0xff]
    %v434 = vld [vmem:[#allocation7 + $0x48] sm:$0xff]
    %v435 = vld [vmem:[#allocation7 + $0x50] sm:$0xff]
    %v436 = vld [vmem:[#allocation7 + $0x58] sm:$0xff]
    %v437 = vld [vmem:[#allocation7 + $0x60] sm:$0xff]
    %v438 = vld [vmem:[#allocation7 + $0x68] sm:$0xff]
    %v439 = vld [vmem:[#allocation7 + $0x70] sm:$0xff]
    %v440 = vld [vmem:[#allocation7 + $0x78] sm:$0xff]
    %v441 = vld [vmem:[#allocation7 + $0x80] sm:$0xff]
    %v442 = vld [vmem:[#allocation7 + $0x88] sm:$0xff]
    %v443 = vld [vmem:[#allocation7 + $0x90] sm:$0xff]
    %v444 = vld [vmem:[#allocation7 + $0x98] sm:$0xff]
    %v445 = vld [vmem:[#allocation7 + $0xa0] sm:$0xff]
    %v446 = vld [vmem:[#allocation7 + $0xa8] sm:$0xff]
    %v447 = vld [vmem:[#allocation7 + $0xb0] sm:$0xff]
    %v448 = vld [vmem:[#allocation7 + $0xb8] sm:$0xff]
    %v449 = vld [vmem:[#allocation7 + $0xc0] sm:$0xff]
    %v450 = vld [vmem:[#allocation7 + $0xc8] sm:$0xff]
    %v451 = vld [vmem:[#allocation7 + $0xd0] sm:$0xff]
    %v452 = vld [vmem:[#allocation7 + $0xd8] sm:$0xff]
    %v453 = vld [vmem:[#allocation7 + $0xe0] sm:$0xff]
    %v454 = vld [vmem:[#allocation7 + $0xe8] sm:$0xff]
    %v455 = vld [vmem:[#allocation7 + $0xf0] sm:$0xff]
    %v456 = vld [vmem:[#allocation7 + $0xf8] sm:$0xff]
    %v457 = vld [vmem:[#allocation7 + $0x100] sm:$0xff]
    %v458 = vld [vmem:[#allocation7 + $0x108] sm:$0xff]
    %v459 = vld [vmem:[#allocation7 + $0x110] sm:$0xff]
    %v460 = vld [vmem:[#allocation7 + $0x118] sm:$0xff]
    %v461 = vld [vmem:[#allocation7 + $0x120] sm:$0xff]
    %v462 = vld [vmem:[#allocation7 + $0x128] sm:$0xff]
    %v463 = vld [vmem:[#allocation7 + $0x130] sm:$0xff]
    %v464 = vld [vmem:[#allocation7 + $0x138] sm:$0xff]
    %v465 = vld [vmem:[#allocation7 + $0x140] sm:$0xff]
    %v466 = vld [vmem:[#allocation7 + $0x148] sm:$0xff]
    %v467 = vld [vmem:[#allocation7 + $0x150] sm:$0xff]
    %v468 = vld [vmem:[#allocation7 + $0x158] sm:$0xff]
    %v469 = vld [vmem:[#allocation7 + $0x160] sm:$0xff]
    %v470 = vld [vmem:[#allocation7 + $0x168] sm:$0xff]
    %v471 = vld [vmem:[#allocation7 + $0x170] sm:$0xff]
    %v472 = vld [vmem:[#allocation7 + $0x178] sm:$0xff]
    %v473 = vld [vmem:[#allocation7 + $0x180] sm:$0xff]
    %v474 = vld [vmem:[#allocation7 + $0x188] sm:$0xff]
    %v475 = vld [vmem:[#allocation7 + $0x190] sm:$0xff]
    %v476 = vld [vmem:[#allocation7 + $0x198] sm:$0xff]
    %v477 = vld [vmem:[#allocation7 + $0x1a0] sm:$0xff]
    %v478 = vld [vmem:[#allocation7 + $0x1a8] sm:$0xff]
    %v479 = vld [vmem:[#allocation7 + $0x1b0] sm:$0xff]
    %v480 = vld [vmem:[#allocation7 + $0x1b8] sm:$0xff]
    %v481 = vld [vmem:[#allocation7 + $0x1c0] sm:$0xff]
    %v482 = vld [vmem:[#allocation7 + $0x1c8] sm:$0xff]
    %v483 = vld [vmem:[#allocation7 + $0x1d0] sm:$0xff]
    %v484 = vld [vmem:[#allocation7 + $0x1d8] sm:$0xff]
    %v485 = vld [vmem:[#allocation7 + $0x1e0] sm:$0xff]
    %v486 = vld [vmem:[#allocation7 + $0x1e8] sm:$0xff]
    %v487 = vld [vmem:[#allocation7 + $0x1f0] sm:$0xff]
    %v488 = vld [vmem:[#allocation7 + $0x1f8] sm:$0xff]
    %v489 = vld [vmem:[#allocation7 + $0x200] sm:$0xff]
    %v490 = vld [vmem:[#allocation7 + $0x208] sm:$0xff]
    %v491 = vld [vmem:[#allocation7 + $0x210] sm:$0xff]
    %v492 = vld [vmem:[#allocation7 + $0x218] sm:$0xff]
    %v493 = vld [vmem:[#allocation7 + $0x220] sm:$0xff]
    %v494 = vld [vmem:[#allocation7 + $0x228] sm:$0xff]
    %v495 = vld [vmem:[#allocation7 + $0x230] sm:$0xff]
    %v496 = vld [vmem:[#allocation7 + $0x238] sm:$0xff]
    %v497 = vld [vmem:[#allocation7 + $0x240] sm:$0xff]
    %v498 = vld [vmem:[#allocation7 + $0x248] sm:$0xff]
    %v499 = vld [vmem:[#allocation7 + $0x250] sm:$0xff]
    %v500 = vld [vmem:[#allocation7 + $0x258] sm:$0xff]
    %v501 = vld [vmem:[#allocation7 + $0x260] sm:$0xff]
    %v502 = vld [vmem:[#allocation7 + $0x268] sm:$0xff]
    %v503 = vld [vmem:[#allocation7 + $0x270] sm:$0xff]
    %v504 = vld [vmem:[#allocation7 + $0x278] sm:$0xff]
    %v505 = vld [vmem:[#allocation7 + $0x280] sm:$0xff]
    %v506 = vld [vmem:[#allocation7 + $0x288] sm:$0xff]
    %v507 = vld [vmem:[#allocation7 + $0x290] sm:$0xff]
    %v508 = vld [vmem:[#allocation7 + $0x298] sm:$0xff]
    %v509 = vld [vmem:[#allocation7 + $0x2a0] sm:$0xff]
    %v510 = vld [vmem:[#allocation7 + $0x2a8] sm:$0xff]
    %v511 = vld [vmem:[#allocation7 + $0x2b0] sm:$0xff]
    %v512 = vld [vmem:[#allocation7 + $0x2b8] sm:$0xff]
    %v513 = vld [vmem:[#allocation7 + $0x2c0] sm:$0xff]
    %v514 = vld [vmem:[#allocation7 + $0x2c8] sm:$0xff]
    %v515 = vld [vmem:[#allocation7 + $0x2d0] sm:$0xff]
    %v516 = vld [vmem:[#allocation7 + $0x2d8] sm:$0xff]
    %v517 = vld [vmem:[#allocation7 + $0x2e0] sm:$0xff]
    %v518 = vld [vmem:[#allocation7 + $0x2e8] sm:$0xff]
    %v519 = vld [vmem:[#allocation7 + $0x2f0] sm:$0xff]
    %v520 = vld [vmem:[#allocation7 + $0x2f8] sm:$0xff]
    %v521 = vld [vmem:[#allocation7 + $0x300] sm:$0xff]
    %v522 = vld [vmem:[#allocation7 + $0x308] sm:$0xff]
    %v523 = vld [vmem:[#allocation7 + $0x310] sm:$0xff]
    %v524 = vld [vmem:[#allocation7 + $0x318] sm:$0xff]
    %v525 = vld [vmem:[#allocation7 + $0x320] sm:$0xff]
    %v526 = vld [vmem:[#allocation7 + $0x328] sm:$0xff]
    %v527 = vld [vmem:[#allocation7 + $0x330] sm:$0xff]
    %v528 = vld [vmem:[#allocation7 + $0x338] sm:$0xff]
    %v529 = vld [vmem:[#allocation7 + $0x340] sm:$0xff]
    %v530 = vld [vmem:[#allocation7 + $0x348] sm:$0xff]
    %v531 = vld [vmem:[#allocation7 + $0x350] sm:$0xff]
    %v532 = vld [vmem:[#allocation7 + $0x358] sm:$0xff]
    %v533 = vld [vmem:[#allocation7 + $0x360] sm:$0xff]
    %v534 = vld [vmem:[#allocation7 + $0x368] sm:$0xff]
    %v535 = vld [vmem:[#allocation7 + $0x370] sm:$0xff]
    %v536 = vld [vmem:[#allocation7 + $0x378] sm:$0xff]
    %v537 = vld [vmem:[#allocation7 + $0x380] sm:$0xff]
    %v538 = vld [vmem:[#allocation7 + $0x388] sm:$0xff]
    %v539 = vld [vmem:[#allocation7 + $0x390] sm:$0xff]
    %v540 = vld [vmem:[#allocation7 + $0x398] sm:$0xff]
    %v541 = vld [vmem:[#allocation7 + $0x3a0] sm:$0xff]
    %v542 = vld [vmem:[#allocation7 + $0x3a8] sm:$0xff]
    %v543 = vld [vmem:[#allocation7 + $0x3b0] sm:$0xff]
    %v544 = vld [vmem:[#allocation7 + $0x3b8] sm:$0xff]
    %v545 = vld [vmem:[#allocation7 + $0x3c0] sm:$0xff]
    %v546 = vld [vmem:[#allocation7 + $0x3c8] sm:$0xff]
    %v547 = vld [vmem:[#allocation7 + $0x3d0] sm:$0xff]
    %v548 = vld [vmem:[#allocation7 + $0x3d8] sm:$0xff]
    %v549 = vld [vmem:[#allocation7 + $0x3e0] sm:$0xff]
    %v550 = vld [vmem:[#allocation7 + $0x3e8] sm:$0xff]
    %v551 = vld [vmem:[#allocation7 + $0x3f0] sm:$0xff]
    %v552 = vld [vmem:[#allocation7 + $0x3f8] sm:$0xff]
    %v555 = vlaneseq
    %v556 = vshrl.u32 %v555, 7
    %v557 = vsub.s32 0, %v556
    %v558 = vrot.slane %v422, %v557
    %v559 = vlaneseq
    %v560 = vshrl.u32 %v559, 7
    %v561 = vsub.s32 1, %v560
    %v562 = vrot.slane %v422, %v561
    %v563 = vlaneseq
    %v564 = vshrl.u32 %v563, 7
    %v565 = vsub.s32 2, %v564
    %v566 = vrot.slane %v422, %v565
    %v567 = vlaneseq
    %v568 = vshrl.u32 %v567, 7
    %v569 = vsub.s32 3, %v568
    %v570 = vrot.slane %v422, %v569
    %v571 = vlaneseq
    %v572 = vshrl.u32 %v571, 7
    %v573 = vsub.s32 4, %v572
    %v574 = vrot.slane %v422, %v573
    %v575 = vlaneseq
    %v576 = vshrl.u32 %v575, 7
    %v577 = vsub.s32 5, %v576
    %v578 = vrot.slane %v422, %v577
    %v579 = vlaneseq
    %v580 = vshrl.u32 %v579, 7
    %v581 = vsub.s32 6, %v580
    %v582 = vrot.slane %v422, %v581
    %v583 = vlaneseq
    %v584 = vshrl.u32 %v583, 7
    %v585 = vsub.s32 7, %v584
    %v586 = vrot.slane %v422, %v585
    %v587 = vlaneseq
    %v588 = vshrl.u32 %v587, 7
    %v589 = vsub.s32 0, %v588
    %v590 = vrot.slane %v423, %v589
    %v591 = vlaneseq
    %v592 = vshrl.u32 %v591, 7
    %v593 = vsub.s32 1, %v592
    %v594 = vrot.slane %v423, %v593
    %v595 = vlaneseq
    %v596 = vshrl.u32 %v595, 7
    %v597 = vsub.s32 2, %v596
    %v598 = vrot.slane %v423, %v597
    %v599 = vlaneseq
    %v600 = vshrl.u32 %v599, 7
    %v601 = vsub.s32 3, %v600
    %v602 = vrot.slane %v423, %v601
    %v603 = vlaneseq
    %v604 = vshrl.u32 %v603, 7
    %v605 = vsub.s32 4, %v604
    %v606 = vrot.slane %v423, %v605
    %v607 = vlaneseq
    %v608 = vshrl.u32 %v607, 7
    %v609 = vsub.s32 5, %v608
    %v610 = vrot.slane %v423, %v609
    %v611 = vlaneseq
    %v612 = vshrl.u32 %v611, 7
    %v613 = vsub.s32 6, %v612
    %v614 = vrot.slane %v423, %v613
    %v615 = vlaneseq
    %v616 = vshrl.u32 %v615, 7
    %v617 = vsub.s32 7, %v616
    %v618 = vrot.slane %v423, %v617
    %v763 = vunpack.c.l.b16 %v425
    %v764 = vunpack.c.h.b16 %v425
    %v765 = vunpack.c.l.b16 %v426
    %v766 = vunpack.c.h.b16 %v426
    %v767 = vunpack.c.l.b16 %v427
    %v768 = vunpack.c.h.b16 %v427
    %v769 = vunpack.c.l.b16 %v428
    %v770 = vunpack.c.h.b16 %v428
    %v771 = vunpack.c.l.b16 %v429
    %v772 = vunpack.c.h.b16 %v429
    %v773 = vunpack.c.l.b16 %v430
    %v774 = vunpack.c.h.b16 %v430
    %v775 = vunpack.c.l.b16 %v431
    %v776 = vunpack.c.h.b16 %v431
    %v777 = vunpack.c.l.b16 %v432
    %v778 = vunpack.c.h.b16 %v432
    %v779 = vunpack.c.l.b16 %v433
    %v780 = vunpack.c.h.b16 %v433
    %v781 = vunpack.c.l.b16 %v434
    %v782 = vunpack.c.h.b16 %v434
    %v783 = vunpack.c.l.b16 %v435
    %v784 = vunpack.c.h.b16 %v435
    %v785 = vunpack.c.l.b16 %v436
    %v786 = vunpack.c.h.b16 %v436
    %v787 = vunpack.c.l.b16 %v437
    %v788 = vunpack.c.h.b16 %v437
    %v789 = vunpack.c.l.b16 %v438
    %v790 = vunpack.c.h.b16 %v438
    %v791 = vunpack.c.l.b16 %v439
    %v792 = vunpack.c.h.b16 %v439
    %v793 = vunpack.c.l.b16 %v440
    %v794 = vunpack.c.h.b16 %v440
    %v795 = vunpack.c.l.b16 %v441
    %v796 = vunpack.c.h.b16 %v441
    %v797 = vunpack.c.l.b16 %v442
    %v798 = vunpack.c.h.b16 %v442
    %v799 = vunpack.c.l.b16 %v443
    %v800 = vunpack.c.h.b16 %v443
    %v801 = vunpack.c.l.b16 %v444
    %v802 = vunpack.c.h.b16 %v444
    %v803 = vunpack.c.l.b16 %v445
    %v804 = vunpack.c.h.b16 %v445
    %v805 = vunpack.c.l.b16 %v446
    %v806 = vunpack.c.h.b16 %v446
    %v807 = vunpack.c.l.b16 %v447
    %v808 = vunpack.c.h.b16 %v447
    %v809 = vunpack.c.l.b16 %v448
    %v810 = vunpack.c.h.b16 %v448
    %v811 = vunpack.c.l.b16 %v449
    %v812 = vunpack.c.h.b16 %v449
    %v813 = vunpack.c.l.b16 %v450
    %v814 = vunpack.c.h.b16 %v450
    %v815 = vunpack.c.l.b16 %v451
    %v816 = vunpack.c.h.b16 %v451
    %v817 = vunpack.c.l.b16 %v452
    %v818 = vunpack.c.h.b16 %v452
    %v819 = vunpack.c.l.b16 %v453
    %v820 = vunpack.c.h.b16 %v453
    %v821 = vunpack.c.l.b16 %v454
    %v822 = vunpack.c.h.b16 %v454
    %v823 = vunpack.c.l.b16 %v455
    %v824 = vunpack.c.h.b16 %v455
    %v825 = vunpack.c.l.b16 %v456
    %v826 = vunpack.c.h.b16 %v456
    %v827 = vunpack.c.l.b16 %v457
    %v828 = vunpack.c.h.b16 %v457
    %v829 = vunpack.c.l.b16 %v458
    %v830 = vunpack.c.h.b16 %v458
    %v831 = vunpack.c.l.b16 %v459
    %v832 = vunpack.c.h.b16 %v459
    %v833 = vunpack.c.l.b16 %v460
    %v834 = vunpack.c.h.b16 %v460
    %v835 = vunpack.c.l.b16 %v461
    %v836 = vunpack.c.h.b16 %v461
    %v837 = vunpack.c.l.b16 %v462
    %v838 = vunpack.c.h.b16 %v462
    %v839 = vunpack.c.l.b16 %v463
    %v840 = vunpack.c.h.b16 %v463
    %v841 = vunpack.c.l.b16 %v464
    %v842 = vunpack.c.h.b16 %v464
    %v843 = vunpack.c.l.b16 %v465
    %v844 = vunpack.c.h.b16 %v465
    %v845 = vunpack.c.l.b16 %v466
    %v846 = vunpack.c.h.b16 %v466
    %v847 = vunpack.c.l.b16 %v467
    %v848 = vunpack.c.h.b16 %v467
    %v849 = vunpack.c.l.b16 %v468
    %v850 = vunpack.c.h.b16 %v468
    %v851 = vunpack.c.l.b16 %v469
    %v852 = vunpack.c.h.b16 %v469
    %v853 = vunpack.c.l.b16 %v470
    %v854 = vunpack.c.h.b16 %v470
    %v855 = vunpack.c.l.b16 %v471
    %v856 = vunpack.c.h.b16 %v471
    %v857 = vunpack.c.l.b16 %v472
    %v858 = vunpack.c.h.b16 %v472
    %v859 = vunpack.c.l.b16 %v473
    %v860 = vunpack.c.h.b16 %v473
    %v861 = vunpack.c.l.b16 %v474
    %v862 = vunpack.c.h.b16 %v474
    %v863 = vunpack.c.l.b16 %v475
    %v864 = vunpack.c.h.b16 %v475
    %v865 = vunpack.c.l.b16 %v476
    %v866 = vunpack.c.h.b16 %v476
    %v867 = vunpack.c.l.b16 %v477
    %v868 = vunpack.c.h.b16 %v477
    %v869 = vunpack.c.l.b16 %v478
    %v870 = vunpack.c.h.b16 %v478
    %v871 = vunpack.c.l.b16 %v479
    %v872 = vunpack.c.h.b16 %v479
    %v873 = vunpack.c.l.b16 %v480
    %v874 = vunpack.c.h.b16 %v480
    %v875 = vunpack.c.l.b16 %v481
    %v876 = vunpack.c.h.b16 %v481
    %v877 = vunpack.c.l.b16 %v482
    %v878 = vunpack.c.h.b16 %v482
    %v879 = vunpack.c.l.b16 %v483
    %v880 = vunpack.c.h.b16 %v483
    %v881 = vunpack.c.l.b16 %v484
    %v882 = vunpack.c.h.b16 %v484
    %v883 = vunpack.c.l.b16 %v485
    %v884 = vunpack.c.h.b16 %v485
    %v885 = vunpack.c.l.b16 %v486
    %v886 = vunpack.c.h.b16 %v486
    %v887 = vunpack.c.l.b16 %v487
    %v888 = vunpack.c.h.b16 %v487
    %v889 = vunpack.c.l.b16 %v488
    %v890 = vunpack.c.h.b16 %v488
    %v891 = vunpack.c.l.b16 %v489
    %v892 = vunpack.c.h.b16 %v489
    %v893 = vunpack.c.l.b16 %v490
    %v894 = vunpack.c.h.b16 %v490
    %v895 = vunpack.c.l.b16 %v491
    %v896 = vunpack.c.h.b16 %v491
    %v897 = vunpack.c.l.b16 %v492
    %v898 = vunpack.c.h.b16 %v492
    %v899 = vunpack.c.l.b16 %v493
    %v900 = vunpack.c.h.b16 %v493
    %v901 = vunpack.c.l.b16 %v494
    %v902 = vunpack.c.h.b16 %v494
    %v903 = vunpack.c.l.b16 %v495
    %v904 = vunpack.c.h.b16 %v495
    %v905 = vunpack.c.l.b16 %v496
    %v906 = vunpack.c.h.b16 %v496
    %v907 = vunpack.c.l.b16 %v497
    %v908 = vunpack.c.h.b16 %v497
    %v909 = vunpack.c.l.b16 %v498
    %v910 = vunpack.c.h.b16 %v498
    %v911 = vunpack.c.l.b16 %v499
    %v912 = vunpack.c.h.b16 %v499
    %v913 = vunpack.c.l.b16 %v500
    %v914 = vunpack.c.h.b16 %v500
    %v915 = vunpack.c.l.b16 %v501
    %v916 = vunpack.c.h.b16 %v501
    %v917 = vunpack.c.l.b16 %v502
    %v918 = vunpack.c.h.b16 %v502
    %v919 = vunpack.c.l.b16 %v503
    %v920 = vunpack.c.h.b16 %v503
    %v921 = vunpack.c.l.b16 %v504
    %v922 = vunpack.c.h.b16 %v504
    %v923 = vunpack.c.l.b16 %v505
    %v924 = vunpack.c.h.b16 %v505
    %v925 = vunpack.c.l.b16 %v506
    %v926 = vunpack.c.h.b16 %v506
    %v927 = vunpack.c.l.b16 %v507
    %v928 = vunpack.c.h.b16 %v507
    %v929 = vunpack.c.l.b16 %v508
    %v930 = vunpack.c.h.b16 %v508
    %v931 = vunpack.c.l.b16 %v509
    %v932 = vunpack.c.h.b16 %v509
    %v933 = vunpack.c.l.b16 %v510
    %v934 = vunpack.c.h.b16 %v510
    %v935 = vunpack.c.l.b16 %v511
    %v936 = vunpack.c.h.b16 %v511
    %v937 = vunpack.c.l.b16 %v512
    %v938 = vunpack.c.h.b16 %v512
    %v939 = vunpack.c.l.b16 %v513
    %v940 = vunpack.c.h.b16 %v513
    %v941 = vunpack.c.l.b16 %v514
    %v942 = vunpack.c.h.b16 %v514
    %v943 = vunpack.c.l.b16 %v515
    %v944 = vunpack.c.h.b16 %v515
    %v945 = vunpack.c.l.b16 %v516
    %v946 = vunpack.c.h.b16 %v516
    %v947 = vunpack.c.l.b16 %v517
    %v948 = vunpack.c.h.b16 %v517
    %v949 = vunpack.c.l.b16 %v518
    %v950 = vunpack.c.h.b16 %v518
    %v951 = vunpack.c.l.b16 %v519
    %v952 = vunpack.c.h.b16 %v519
    %v953 = vunpack.c.l.b16 %v520
    %v954 = vunpack.c.h.b16 %v520
    %v955 = vunpack.c.l.b16 %v521
    %v956 = vunpack.c.h.b16 %v521
    %v957 = vunpack.c.l.b16 %v522
    %v958 = vunpack.c.h.b16 %v522
    %v959 = vunpack.c.l.b16 %v523
    %v960 = vunpack.c.h.b16 %v523
    %v961 = vunpack.c.l.b16 %v524
    %v962 = vunpack.c.h.b16 %v524
    %v963 = vunpack.c.l.b16 %v525
    %v964 = vunpack.c.h.b16 %v525
    %v965 = vunpack.c.l.b16 %v526
    %v966 = vunpack.c.h.b16 %v526
    %v967 = vunpack.c.l.b16 %v527
    %v968 = vunpack.c.h.b16 %v527
    %v969 = vunpack.c.l.b16 %v528
    %v970 = vunpack.c.h.b16 %v528
    %v971 = vunpack.c.l.b16 %v529
    %v972 = vunpack.c.h.b16 %v529
    %v973 = vunpack.c.l.b16 %v530
    %v974 = vunpack.c.h.b16 %v530
    %v975 = vunpack.c.l.b16 %v531
    %v976 = vunpack.c.h.b16 %v531
    %v977 = vunpack.c.l.b16 %v532
    %v978 = vunpack.c.h.b16 %v532
    %v979 = vunpack.c.l.b16 %v533
    %v980 = vunpack.c.h.b16 %v533
    %v981 = vunpack.c.l.b16 %v534
    %v982 = vunpack.c.h.b16 %v534
    %v983 = vunpack.c.l.b16 %v535
    %v984 = vunpack.c.h.b16 %v535
    %v985 = vunpack.c.l.b16 %v536
    %v986 = vunpack.c.h.b16 %v536
    %v987 = vunpack.c.l.b16 %v537
    %v988 = vunpack.c.h.b16 %v537
    %v989 = vunpack.c.l.b16 %v538
    %v990 = vunpack.c.h.b16 %v538
    %v991 = vunpack.c.l.b16 %v539
    %v992 = vunpack.c.h.b16 %v539
    %v993 = vunpack.c.l.b16 %v540
    %v994 = vunpack.c.h.b16 %v540
    %v995 = vunpack.c.l.b16 %v541
    %v996 = vunpack.c.h.b16 %v541
    %v997 = vunpack.c.l.b16 %v542
    %v998 = vunpack.c.h.b16 %v542
    %v999 = vunpack.c.l.b16 %v543
    %v1000 = vunpack.c.h.b16 %v543
    %v1001 = vunpack.c.l.b16 %v544
    %v1002 = vunpack.c.h.b16 %v544
    %v1003 = vunpack.c.l.b16 %v545
    %v1004 = vunpack.c.h.b16 %v545
    %v1005 = vunpack.c.l.b16 %v546
    %v1006 = vunpack.c.h.b16 %v546
    %v1007 = vunpack.c.l.b16 %v547
    %v1008 = vunpack.c.h.b16 %v547
    %v1009 = vunpack.c.l.b16 %v548
    %v1010 = vunpack.c.h.b16 %v548
    %v1011 = vunpack.c.l.b16 %v549
    %v1012 = vunpack.c.h.b16 %v549
    %v1013 = vunpack.c.l.b16 %v550
    %v1014 = vunpack.c.h.b16 %v550
    %v1015 = vunpack.c.l.b16 %v551
    %v1016 = vunpack.c.h.b16 %v551
    %v1017 = vunpack.c.l.b16 %v552
    %v1018 = vunpack.c.h.b16 %v552
    %v1019 = vpack.c.b16 %v779, %v763
    %v1020 = vpack.c.b16 %v780, %v764
    %v1021 = vpack.c.b16 %v781, %v765
    %v1022 = vpack.c.b16 %v782, %v766
    %v1023 = vpack.c.b16 %v783, %v767
    %v1024 = vpack.c.b16 %v784, %v768
    %v1025 = vpack.c.b16 %v785, %v769
    %v1026 = vpack.c.b16 %v786, %v770
    %v1027 = vpack.c.b16 %v787, %v771
    %v1028 = vpack.c.b16 %v788, %v772
    %v1029 = vpack.c.b16 %v789, %v773
    %v1030 = vpack.c.b16 %v790, %v774
    %v1031 = vpack.c.b16 %v791, %v775
    %v1032 = vpack.c.b16 %v792, %v776
    %v1033 = vpack.c.b16 %v793, %v777
    %v1034 = vpack.c.b16 %v794, %v778
    %v1035 = vpack.c.b16 %v811, %v795
    %v1036 = vpack.c.b16 %v812, %v796
    %v1037 = vpack.c.b16 %v813, %v797
    %v1038 = vpack.c.b16 %v814, %v798
    %v1039 = vpack.c.b16 %v815, %v799
    %v1040 = vpack.c.b16 %v816, %v800
    %v1041 = vpack.c.b16 %v817, %v801
    %v1042 = vpack.c.b16 %v818, %v802
    %v1043 = vpack.c.b16 %v819, %v803
    %v1044 = vpack.c.b16 %v820, %v804
    %v1045 = vpack.c.b16 %v821, %v805
    %v1046 = vpack.c.b16 %v822, %v806
    %v1047 = vpack.c.b16 %v823, %v807
    %v1048 = vpack.c.b16 %v824, %v808
    %v1049 = vpack.c.b16 %v825, %v809
    %v1050 = vpack.c.b16 %v826, %v810
    %v1051 = vpack.c.b16 %v843, %v827
    %v1052 = vpack.c.b16 %v844, %v828
    %v1053 = vpack.c.b16 %v845, %v829
    %v1054 = vpack.c.b16 %v846, %v830
    %v1055 = vpack.c.b16 %v847, %v831
    %v1056 = vpack.c.b16 %v848, %v832
    %v1057 = vpack.c.b16 %v849, %v833
    %v1058 = vpack.c.b16 %v850, %v834
    %v1059 = vpack.c.b16 %v851, %v835
    %v1060 = vpack.c.b16 %v852, %v836
    %v1061 = vpack.c.b16 %v853, %v837
    %v1062 = vpack.c.b16 %v854, %v838
    %v1063 = vpack.c.b16 %v855, %v839
    %v1064 = vpack.c.b16 %v856, %v840
    %v1065 = vpack.c.b16 %v857, %v841
    %v1066 = vpack.c.b16 %v858, %v842
    %v1067 = vpack.c.b16 %v875, %v859
    %v1068 = vpack.c.b16 %v876, %v860
    %v1069 = vpack.c.b16 %v877, %v861
    %v1070 = vpack.c.b16 %v878, %v862
    %v1071 = vpack.c.b16 %v879, %v863
    %v1072 = vpack.c.b16 %v880, %v864
    %v1073 = vpack.c.b16 %v881, %v865
    %v1074 = vpack.c.b16 %v882, %v866
    %v1075 = vpack.c.b16 %v883, %v867
    %v1076 = vpack.c.b16 %v884, %v868
    %v1077 = vpack.c.b16 %v885, %v869
    %v1078 = vpack.c.b16 %v886, %v870
    %v1079 = vpack.c.b16 %v887, %v871
    %v1080 = vpack.c.b16 %v888, %v872
    %v1081 = vpack.c.b16 %v889, %v873
    %v1082 = vpack.c.b16 %v890, %v874
    %v1083 = vpack.c.b16 %v907, %v891
    %v1084 = vpack.c.b16 %v908, %v892
    %v1085 = vpack.c.b16 %v909, %v893
    %v1086 = vpack.c.b16 %v910, %v894
    %v1087 = vpack.c.b16 %v911, %v895
    %v1088 = vpack.c.b16 %v912, %v896
    %v1089 = vpack.c.b16 %v913, %v897
    %v1090 = vpack.c.b16 %v914, %v898
    %v1091 = vpack.c.b16 %v915, %v899
    %v1092 = vpack.c.b16 %v916, %v900
    %v1093 = vpack.c.b16 %v917, %v901
    %v1094 = vpack.c.b16 %v918, %v902
    %v1095 = vpack.c.b16 %v919, %v903
    %v1096 = vpack.c.b16 %v920, %v904
    %v1097 = vpack.c.b16 %v921, %v905
    %v1098 = vpack.c.b16 %v922, %v906
    %v1099 = vpack.c.b16 %v939, %v923
    %v1100 = vpack.c.b16 %v940, %v924
    %v1101 = vpack.c.b16 %v941, %v925
    %v1102 = vpack.c.b16 %v942, %v926
    %v1103 = vpack.c.b16 %v943, %v927
    %v1104 = vpack.c.b16 %v944, %v928
    %v1105 = vpack.c.b16 %v945, %v929
    %v1106 = vpack.c.b16 %v946, %v930
    %v1107 = vpack.c.b16 %v947, %v931
    %v1108 = vpack.c.b16 %v948, %v932
    %v1109 = vpack.c.b16 %v949, %v933
    %v1110 = vpack.c.b16 %v950, %v934
    %v1111 = vpack.c.b16 %v951, %v935
    %v1112 = vpack.c.b16 %v952, %v936
    %v1113 = vpack.c.b16 %v953, %v937
    %v1114 = vpack.c.b16 %v954, %v938
    %v1115 = vpack.c.b16 %v971, %v955
    %v1116 = vpack.c.b16 %v972, %v956
    %v1117 = vpack.c.b16 %v973, %v957
    %v1118 = vpack.c.b16 %v974, %v958
    %v1119 = vpack.c.b16 %v975, %v959
    %v1120 = vpack.c.b16 %v976, %v960
    %v1121 = vpack.c.b16 %v977, %v961
    %v1122 = vpack.c.b16 %v978, %v962
    %v1123 = vpack.c.b16 %v979, %v963
    %v1124 = vpack.c.b16 %v980, %v964
    %v1125 = vpack.c.b16 %v981, %v965
    %v1126 = vpack.c.b16 %v982, %v966
    %v1127 = vpack.c.b16 %v983, %v967
    %v1128 = vpack.c.b16 %v984, %v968
    %v1129 = vpack.c.b16 %v985, %v969
    %v1130 = vpack.c.b16 %v986, %v970
    %v1131 = vpack.c.b16 %v1003, %v987
    %v1132 = vpack.c.b16 %v1004, %v988
    %v1133 = vpack.c.b16 %v1005, %v989
    %v1134 = vpack.c.b16 %v1006, %v990
    %v1135 = vpack.c.b16 %v1007, %v991
    %v1136 = vpack.c.b16 %v1008, %v992
    %v1137 = vpack.c.b16 %v1009, %v993
    %v1138 = vpack.c.b16 %v1010, %v994
    %v1139 = vpack.c.b16 %v1011, %v995
    %v1140 = vpack.c.b16 %v1012, %v996
    %v1141 = vpack.c.b16 %v1013, %v997
    %v1142 = vpack.c.b16 %v1014, %v998
    %v1143 = vpack.c.b16 %v1015, %v999
    %v1144 = vpack.c.b16 %v1016, %v1000
    %v1145 = vpack.c.b16 %v1017, %v1001
    %v1146 = vpack.c.b16 %v1018, %v1002
    %1275 = vmatprep.subr.bf16.mxu0 %v1020
    %1276 = vmatpush1.bf16.msra.mxu0 %v1019
    %1277 = vmatprep.subr.bf16.mxu0 %v1036
    %1278 = vmatpush1.bf16.msra.mxu0 %v1035
    %1279 = vmatprep.subr.bf16.mxu0 %v1052
    %1280 = vmatpush1.bf16.msra.mxu0 %v1051
    %1281 = vmatprep.subr.bf16.mxu0 %v1068
    %1282 = vmatpush1.bf16.msra.mxu0 %v1067
    %1283 = vmatprep.subr.bf16.mxu0 %v1084
    %1284 = vmatpush1.bf16.msra.mxu0 %v1083
    %1285 = vmatprep.subr.bf16.mxu0 %v1100
    %1286 = vmatpush1.bf16.msra.mxu0 %v1099
    %1287 = vmatprep.subr.bf16.mxu0 %v1116
    %1288 = vmatpush1.bf16.msra.mxu0 %v1115
    %1289 = vmatprep.subr.bf16.mxu0 %v1132
    %1290 = vmatpush1.bf16.msra.mxu0 %v1131
    %1291 = vmatprep.subr.bf16.mxu0 0
    %1292 = vmatpush1.bf16.msra.mxu0 0
    %1293 = vmatprep.subr.bf16.mxu0 0
    %1294 = vmatpush1.bf16.msra.mxu0 0
    %1295 = vmatprep.subr.bf16.mxu0 0
    %1296 = vmatpush1.bf16.msra.mxu0 0
    %1297 = vmatprep.subr.bf16.mxu0 0
    %1298 = vmatpush1.bf16.msra.mxu0 0
    %1299 = vmatprep.subr.bf16.mxu0 0
    %1300 = vmatpush1.bf16.msra.mxu0 0
    %1301 = vmatprep.subr.bf16.mxu0 0
    %1302 = vmatpush1.bf16.msra.mxu0 0
    %1303 = vmatprep.subr.bf16.mxu0 0
    %1304 = vmatpush1.bf16.msra.mxu0 0
    %1305 = vmatprep.subr.bf16.mxu0 0
    %1306 = vmatpush1.bf16.msra.mxu0 0
    %1307 = vmatprep.mubr.bf16.mxu0 0
    %1308 = vmatmul.mubr.bf16.gmra.mrb[0].mxu0 %v424
    %v1309 = vpop.f32.mrb[0].mxu0
    %v1310 = vadd.f32 %v558, %v1309
    %v1311 = vpop.f32.mrb[0].mxu0
    %v1312 = vadd.f32 %v562, %v1311
    %v1313 = vpop.f32.mrb[0].mxu0
    %v1314 = vpop.f32.mrb[0].mxu0
    %1315 = vdwg.mxu0
    %1316 = vmatprep.subr.bf16.mxu0 %v1022
    %1317 = vmatpush1.bf16.msra.mxu0 %v1021
    %1318 = vmatprep.subr.bf16.mxu0 %v1038
    %1319 = vmatpush1.bf16.msra.mxu0 %v1037
    %1320 = vmatprep.subr.bf16.mxu0 %v1054
    %1321 = vmatpush1.bf16.msra.mxu0 %v1053
    %1322 = vmatprep.subr.bf16.mxu0 %v1070
    %1323 = vmatpush1.bf16.msra.mxu0 %v1069
    %1324 = vmatprep.subr.bf16.mxu0 %v1086
    %1325 = vmatpush1.bf16.msra.mxu0 %v1085
    %1326 = vmatprep.subr.bf16.mxu0 %v1102
    %1327 = vmatpush1.bf16.msra.mxu0 %v1101
    %1328 = vmatprep.subr.bf16.mxu0 %v1118
    %1329 = vmatpush1.bf16.msra.mxu0 %v1117
    %1330 = vmatprep.subr.bf16.mxu0 %v1134
    %1331 = vmatpush1.bf16.msra.mxu0 %v1133
    %1332 = vmatprep.subr.bf16.mxu0 0
    %1333 = vmatpush1.bf16.msra.mxu0 0
    %1334 = vmatprep.subr.bf16.mxu0 0
    %1335 = vmatpush1.bf16.msra.mxu0 0
    %1336 = vmatprep.subr.bf16.mxu0 0
    %1337 = vmatpush1.bf16.msra.mxu0 0
    %1338 = vmatprep.subr.bf16.mxu0 0
    %1339 = vmatpush1.bf16.msra.mxu0 0
    %1340 = vmatprep.subr.bf16.mxu0 0
    %1341 = vmatpush1.bf16.msra.mxu0 0
    %1342 = vmatprep.subr.bf16.mxu0 0
    %1343 = vmatpush1.bf16.msra.mxu0 0
    %1344 = vmatprep.subr.bf16.mxu0 0
    %1345 = vmatpush1.bf16.msra.mxu0 0
    %1346 = vmatprep.subr.bf16.mxu0 0
    %1347 = vmatpush1.bf16.msra.mxu0 0
    %1348 = vmatprep.mubr.bf16.mxu0 0
    %1349 = vmatmul.mubr.bf16.gmra.mrb[0].mxu0 %v424
    %v1350 = vpop.f32.mrb[0].mxu0
    %v1351 = vadd.f32 %v566, %v1350
    %v1352 = vpop.f32.mrb[0].mxu0
    %v1353 = vadd.f32 %v570, %v1352
    %v1354 = vpop.f32.mrb[0].mxu0
    %v1355 = vpop.f32.mrb[0].mxu0
    %1356 = vdwg.mxu0
    %1357 = vmatprep.subr.bf16.mxu0 %v1024
    %1358 = vmatpush1.bf16.msra.mxu0 %v1023
    %1359 = vmatprep.subr.bf16.mxu0 %v1040
    %1360 = vmatpush1.bf16.msra.mxu0 %v1039
    %1361 = vmatprep.subr.bf16.mxu0 %v1056
    %1362 = vmatpush1.bf16.msra.mxu0 %v1055
    %1363 = vmatprep.subr.bf16.mxu0 %v1072
    %1364 = vmatpush1.bf16.msra.mxu0 %v1071
    %1365 = vmatprep.subr.bf16.mxu0 %v1088
    %1366 = vmatpush1.bf16.msra.mxu0 %v1087
    %1367 = vmatprep.subr.bf16.mxu0 %v1104
    %1368 = vmatpush1.bf16.msra.mxu0 %v1103
    %1369 = vmatprep.subr.bf16.mxu0 %v1120
    %1370 = vmatpush1.bf16.msra.mxu0 %v1119
    %1371 = vmatprep.subr.bf16.mxu0 %v1136
    %1372 = vmatpush1.bf16.msra.mxu0 %v1135
    %1373 = vmatprep.subr.bf16.mxu0 0
    %1374 = vmatpush1.bf16.msra.mxu0 0
    %1375 = vmatprep.subr.bf16.mxu0 0
    %1376 = vmatpush1.bf16.msra.mxu0 0
    %1377 = vmatprep.subr.bf16.mxu0 0
    %1378 = vmatpush1.bf16.msra.mxu0 0
    %1379 = vmatprep.subr.bf16.mxu0 0
    %1380 = vmatpush1.bf16.msra.mxu0 0
    %1381 = vmatprep.subr.bf16.mxu0 0
    %1382 = vmatpush1.bf16.msra.mxu0 0
    %1383 = vmatprep.subr.bf16.mxu0 0
    %1384 = vmatpush1.bf16.msra.mxu0 0
    %1385 = vmatprep.subr.bf16.mxu0 0
    %1386 = vmatpush1.bf16.msra.mxu0 0
    %1387 = vmatprep.subr.bf16.mxu0 0
    %1388 = vmatpush1.bf16.msra.mxu0 0
    %1389 = vmatprep.mubr.bf16.mxu0 0
    %1390 = vmatmul.mubr.bf16.gmra.mrb[0].mxu0 %v424
    %v1391 = vpop.f32.mrb[0].mxu0
    %v1392 = vadd.f32 %v574, %v1391
    %v1393 = vpop.f32.mrb[0].mxu0
    %v1394 = vadd.f32 %v578, %v1393
    %v1395 = vpop.f32.mrb[0].mxu0
    %v1396 = vpop.f32.mrb[0].mxu0
    %1397 = vdwg.mxu0
    %1398 = vmatprep.subr.bf16.mxu0 %v1026
    %1399 = vmatpush1.bf16.msra.mxu0 %v1025
    %1400 = vmatprep.subr.bf16.mxu0 %v1042
    %1401 = vmatpush1.bf16.msra.mxu0 %v1041
    %1402 = vmatprep.subr.bf16.mxu0 %v1058
    %1403 = vmatpush1.bf16.msra.mxu0 %v1057
    %1404 = vmatprep.subr.bf16.mxu0 %v1074
    %1405 = vmatpush1.bf16.msra.mxu0 %v1073
    %1406 = vmatprep.subr.bf16.mxu0 %v1090
    %1407 = vmatpush1.bf16.msra.mxu0 %v1089
    %1408 = vmatprep.subr.bf16.mxu0 %v1106
    %1409 = vmatpush1.bf16.msra.mxu0 %v1105
    %1410 = vmatprep.subr.bf16.mxu0 %v1122
    %1411 = vmatpush1.bf16.msra.mxu0 %v1121
    %1412 = vmatprep.subr.bf16.mxu0 %v1138
    %1413 = vmatpush1.bf16.msra.mxu0 %v1137
    %1414 = vmatprep.subr.bf16.mxu0 0
    %1415 = vmatpush1.bf16.msra.mxu0 0
    %1416 = vmatprep.subr.bf16.mxu0 0
    %1417 = vmatpush1.bf16.msra.mxu0 0
    %1418 = vmatprep.subr.bf16.mxu0 0
    %1419 = vmatpush1.bf16.msra.mxu0 0
    %1420 = vmatprep.subr.bf16.mxu0 0
    %1421 = vmatpush1.bf16.msra.mxu0 0
    %1422 = vmatprep.subr.bf16.mxu0 0
    %1423 = vmatpush1.bf16.msra.mxu0 0
    %1424 = vmatprep.subr.bf16.mxu0 0
    %1425 = vmatpush1.bf16.msra.mxu0 0
    %1426 = vmatprep.subr.bf16.mxu0 0
    %1427 = vmatpush1.bf16.msra.mxu0 0
    %1428 = vmatprep.subr.bf16.mxu0 0
    %1429 = vmatpush1.bf16.msra.mxu0 0
    %1430 = vmatprep.mubr.bf16.mxu0 0
    %1431 = vmatmul.mubr.bf16.gmra.mrb[0].mxu0 %v424
    %v1432 = vpop.f32.mrb[0].mxu0
    %v1433 = vadd.f32 %v582, %v1432
    %v1434 = vpop.f32.mrb[0].mxu0
    %v1435 = vadd.f32 %v586, %v1434
    %v1436 = vpop.f32.mrb[0].mxu0
    %v1437 = vpop.f32.mrb[0].mxu0
    %1438 = vdwg.mxu0
    %1439 = vmatprep.subr.bf16.mxu0 %v1028
    %1440 = vmatpush1.bf16.msra.mxu0 %v1027
    %1441 = vmatprep.subr.bf16.mxu0 %v1044
    %1442 = vmatpush1.bf16.msra.mxu0 %v1043
    %1443 = vmatprep.subr.bf16.mxu0 %v1060
    %1444 = vmatpush1.bf16.msra.mxu0 %v1059
    %1445 = vmatprep.subr.bf16.mxu0 %v1076
    %1446 = vmatpush1.bf16.msra.mxu0 %v1075
    %1447 = vmatprep.subr.bf16.mxu0 %v1092
    %1448 = vmatpush1.bf16.msra.mxu0 %v1091
    %1449 = vmatprep.subr.bf16.mxu0 %v1108
    %1450 = vmatpush1.bf16.msra.mxu0 %v1107
    %1451 = vmatprep.subr.bf16.mxu0 %v1124
    %1452 = vmatpush1.bf16.msra.mxu0 %v1123
    %1453 = vmatprep.subr.bf16.mxu0 %v1140
    %1454 = vmatpush1.bf16.msra.mxu0 %v1139
    %1455 = vmatprep.subr.bf16.mxu0 0
    %1456 = vmatpush1.bf16.msra.mxu0 0
    %1457 = vmatprep.subr.bf16.mxu0 0
    %1458 = vmatpush1.bf16.msra.mxu0 0
    %1459 = vmatprep.subr.bf16.mxu0 0
    %1460 = vmatpush1.bf16.msra.mxu0 0
    %1461 = vmatprep.subr.bf16.mxu0 0
    %1462 = vmatpush1.bf16.msra.mxu0 0
    %1463 = vmatprep.subr.bf16.mxu0 0
    %1464 = vmatpush1.bf16.msra.mxu0 0
    %1465 = vmatprep.subr.bf16.mxu0 0
    %1466 = vmatpush1.bf16.msra.mxu0 0
    %1467 = vmatprep.subr.bf16.mxu0 0
    %1468 = vmatpush1.bf16.msra.mxu0 0
    %1469 = vmatprep.subr.bf16.mxu0 0
    %1470 = vmatpush1.bf16.msra.mxu0 0
    %1471 = vmatprep.mubr.bf16.mxu0 0
    %1472 = vmatmul.mubr.bf16.gmra.mrb[0].mxu0 %v424
    %v1473 = vpop.f32.mrb[0].mxu0
    %v1474 = vadd.f32 %v590, %v1473
    %v1475 = vpop.f32.mrb[0].mxu0
    %v1476 = vadd.f32 %v594, %v1475
    %v1477 = vpop.f32.mrb[0].mxu0
    %v1478 = vpop.f32.mrb[0].mxu0
    %1479 = vdwg.mxu0
    %1480 = vmatprep.subr.bf16.mxu0 %v1030
    %1481 = vmatpush1.bf16.msra.mxu0 %v1029
    %1482 = vmatprep.subr.bf16.mxu0 %v1046
    %1483 = vmatpush1.bf16.msra.mxu0 %v1045
    %1484 = vmatprep.subr.bf16.mxu0 %v1062
    %1485 = vmatpush1.bf16.msra.mxu0 %v1061
    %1486 = vmatprep.subr.bf16.mxu0 %v1078
    %1487 = vmatpush1.bf16.msra.mxu0 %v1077
    %1488 = vmatprep.subr.bf16.mxu0 %v1094
    %1489 = vmatpush1.bf16.msra.mxu0 %v1093
    %1490 = vmatprep.subr.bf16.mxu0 %v1110
    %1491 = vmatpush1.bf16.msra.mxu0 %v1109
    %1492 = vmatprep.subr.bf16.mxu0 %v1126
    %1493 = vmatpush1.bf16.msra.mxu0 %v1125
    %1494 = vmatprep.subr.bf16.mxu0 %v1142
    %1495 = vmatpush1.bf16.msra.mxu0 %v1141
    %1496 = vmatprep.subr.bf16.mxu0 0
    %1497 = vmatpush1.bf16.msra.mxu0 0
    %1498 = vmatprep.subr.bf16.mxu0 0
    %1499 = vmatpush1.bf16.msra.mxu0 0
    %1500 = vmatprep.subr.bf16.mxu0 0
    %1501 = vmatpush1.bf16.msra.mxu0 0
    %1502 = vmatprep.subr.bf16.mxu0 0
    %1503 = vmatpush1.bf16.msra.mxu0 0
    %1504 = vmatprep.subr.bf16.mxu0 0
    %1505 = vmatpush1.bf16.msra.mxu0 0
    %1506 = vmatprep.subr.bf16.mxu0 0
    %1507 = vmatpush1.bf16.msra.mxu0 0
    %1508 = vmatprep.subr.bf16.mxu0 0
    %1509 = vmatpush1.bf16.msra.mxu0 0
    %1510 = vmatprep.subr.bf16.mxu0 0
    %1511 = vmatpush1.bf16.msra.mxu0 0
    %1512 = vmatprep.mubr.bf16.mxu0 0
    %1513 = vmatmul.mubr.bf16.gmra.mrb[0].mxu0 %v424
    %v1514 = vpop.f32.mrb[0].mxu0
    %v1515 = vadd.f32 %v598, %v1514
    %v1516 = vpop.f32.mrb[0].mxu0
    %v1517 = vadd.f32 %v602, %v1516
    %v1518 = vpop.f32.mrb[0].mxu0
    %v1519 = vpop.f32.mrb[0].mxu0
    %1520 = vdwg.mxu0
    %1521 = vmatprep.subr.bf16.mxu0 %v1032
    %1522 = vmatpush1.bf16.msra.mxu0 %v1031
    %1523 = vmatprep.subr.bf16.mxu0 %v1048
    %1524 = vmatpush1.bf16.msra.mxu0 %v1047
    %1525 = vmatprep.subr.bf16.mxu0 %v1064
    %1526 = vmatpush1.bf16.msra.mxu0 %v1063
    %1527 = vmatprep.subr.bf16.mxu0 %v1080
    %1528 = vmatpush1.bf16.msra.mxu0 %v1079
    %1529 = vmatprep.subr.bf16.mxu0 %v1096
    %1530 = vmatpush1.bf16.msra.mxu0 %v1095
    %1531 = vmatprep.subr.bf16.mxu0 %v1112
    %1532 = vmatpush1.bf16.msra.mxu0 %v1111
    %1533 = vmatprep.subr.bf16.mxu0 %v1128
    %1534 = vmatpush1.bf16.msra.mxu0 %v1127
    %1535 = vmatprep.subr.bf16.mxu0 %v1144
    %1536 = vmatpush1.bf16.msra.mxu0 %v1143
    %1537 = vmatprep.subr.bf16.mxu0 0
    %1538 = vmatpush1.bf16.msra.mxu0 0
    %1539 = vmatprep.subr.bf16.mxu0 0
    %1540 = vmatpush1.bf16.msra.mxu0 0
    %1541 = vmatprep.subr.bf16.mxu0 0
    %1542 = vmatpush1.bf16.msra.mxu0 0
    %1543 = vmatprep.subr.bf16.mxu0 0
    %1544 = vmatpush1.bf16.msra.mxu0 0
    %1545 = vmatprep.subr.bf16.mxu0 0
    %1546 = vmatpush1.bf16.msra.mxu0 0
    %1547 = vmatprep.subr.bf16.mxu0 0
    %1548 = vmatpush1.bf16.msra.mxu0 0
    %1549 = vmatprep.subr.bf16.mxu0 0
    %1550 = vmatpush1.bf16.msra.mxu0 0
    %1551 = vmatprep.subr.bf16.mxu0 0
    %1552 = vmatpush1.bf16.msra.mxu0 0
    %1553 = vmatprep.mubr.bf16.mxu0 0
    %1554 = vmatmul.mubr.bf16.gmra.mrb[0].mxu0 %v424
    %v1555 = vpop.f32.mrb[0].mxu0
    %v1556 = vadd.f32 %v606, %v1555
    %v1557 = vpop.f32.mrb[0].mxu0
    %v1558 = vadd.f32 %v610, %v1557
    %v1559 = vpop.f32.mrb[0].mxu0
    %v1560 = vpop.f32.mrb[0].mxu0
    %1561 = vdwg.mxu0
    %1562 = vmatprep.subr.bf16.mxu0 %v1034
    %1563 = vmatpush1.bf16.msra.mxu0 %v1033
    %1564 = vmatprep.subr.bf16.mxu0 %v1050
    %1565 = vmatpush1.bf16.msra.mxu0 %v1049
    %1566 = vmatprep.subr.bf16.mxu0 %v1066
    %1567 = vmatpush1.bf16.msra.mxu0 %v1065
    %1568 = vmatprep.subr.bf16.mxu0 %v1082
    %1569 = vmatpush1.bf16.msra.mxu0 %v1081
    %1570 = vmatprep.subr.bf16.mxu0 %v1098
    %1571 = vmatpush1.bf16.msra.mxu0 %v1097
    %1572 = vmatprep.subr.bf16.mxu0 %v1114
    %1573 = vmatpush1.bf16.msra.mxu0 %v1113
    %1574 = vmatprep.subr.bf16.mxu0 %v1130
    %1575 = vmatpush1.bf16.msra.mxu0 %v1129
    %1576 = vmatprep.subr.bf16.mxu0 %v1146
    %1577 = vmatpush1.bf16.msra.mxu0 %v1145
    %1578 = vmatprep.subr.bf16.mxu0 0
    %1579 = vmatpush1.bf16.msra.mxu0 0
    %1580 = vmatprep.subr.bf16.mxu0 0
    %1581 = vmatpush1.bf16.msra.mxu0 0
    %1582 = vmatprep.subr.bf16.mxu0 0
    %1583 = vmatpush1.bf16.msra.mxu0 0
    %1584 = vmatprep.subr.bf16.mxu0 0
    %1585 = vmatpush1.bf16.msra.mxu0 0
    %1586 = vmatprep.subr.bf16.mxu0 0
    %1587 = vmatpush1.bf16.msra.mxu0 0
    %1588 = vmatprep.subr.bf16.mxu0 0
    %1589 = vmatpush1.bf16.msra.mxu0 0
    %1590 = vmatprep.subr.bf16.mxu0 0
    %1591 = vmatpush1.bf16.msra.mxu0 0
    %1592 = vmatprep.subr.bf16.mxu0 0
    %1593 = vmatpush1.bf16.msra.mxu0 0
    %1594 = vmatprep.mubr.bf16.mxu0 0
    %1595 = vmatmul.mubr.bf16.gmra.mrb[0].mxu0 %v424
    %v1596 = vpop.f32.mrb[0].mxu0
    %v1597 = vadd.f32 %v614, %v1596
    %v1598 = vpop.f32.mrb[0].mxu0
    %v1599 = vadd.f32 %v618, %v1598
    %v1600 = vpop.f32.mrb[0].mxu0
    %v1601 = vpop.f32.mrb[0].mxu0
    %1602 = vdwg.mxu0
    %1603 = vst [vmem:[#allocation14] sm:$0xff] %v1310
    %1604 = vst [vmem:[#allocation14 + $0x8] sm:$0xff] %v1312
    %1605 = vst [vmem:[#allocation14 + $0x10] sm:$0xff] %v1351
    %1606 = vst [vmem:[#allocation14 + $0x18] sm:$0xff] %v1353
    %1607 = vst [vmem:[#allocation14 + $0x20] sm:$0xff] %v1392
    %1608 = vst [vmem:[#allocation14 + $0x28] sm:$0xff] %v1394
    %1609 = vst [vmem:[#allocation14 + $0x30] sm:$0xff] %v1433
    %1610 = vst [vmem:[#allocation14 + $0x38] sm:$0xff] %v1435
    %1611 = vst [vmem:[#allocation15] sm:$0xff] %v1474
    %1612 = vst [vmem:[#allocation15 + $0x8] sm:$0xff] %v1476
    %1613 = vst [vmem:[#allocation15 + $0x10] sm:$0xff] %v1515
    %1614 = vst [vmem:[#allocation15 + $0x18] sm:$0xff] %v1517
    %1615 = vst [vmem:[#allocation15 + $0x20] sm:$0xff] %v1556
    %1616 = vst [vmem:[#allocation15 + $0x28] sm:$0xff] %v1558
    %1617 = vst [vmem:[#allocation15 + $0x30] sm:$0xff] %v1597
    %1618 = vst [vmem:[#allocation15 + $0x38] sm:$0xff] %v1599
    %v1619 = vld [vmem:[#allocation2] sm:$0xff]
    %v1620 = vld [vmem:[#allocation2 + $0x8] sm:$0xff]
    %v1621 = vld [vmem:[#allocation2 + $0x10] sm:$0xff]
    %v1622 = vld [vmem:[#allocation2 + $0x18] sm:$0xff]
    %v1623 = vld [vmem:[#allocation2 + $0x20] sm:$0xff]
    %v1624 = vld [vmem:[#allocation2 + $0x28] sm:$0xff]
    %v1625 = vld [vmem:[#allocation2 + $0x30] sm:$0xff]
    %v1626 = vld [vmem:[#allocation2 + $0x38] sm:$0xff]
    %v1627 = vmul.f32 %v1474, 0.5
    %v1628 = vmul.f32 %v1476, 0.5
    %v1629 = vmul.f32 %v1515, 0.5
    %v1630 = vmul.f32 %v1517, 0.5
    %v1631 = vmul.f32 %v1556, 0.5
    %v1632 = vmul.f32 %v1558, 0.5
    %v1633 = vmul.f32 %v1597, 0.5
    %v1634 = vmul.f32 %v1599, 0.5
    %v1635 = vmul.f32 %v1627, 1.442695
    %v1636 = vpow.pop %v1635
    %v1637 = vmul.f32 %v1628, 1.442695
    %v1638 = vpow.pop %v1637
    %v1639 = vmul.f32 %v1629, 1.442695
    %v1640 = vpow.pop %v1639
    %v1641 = vmul.f32 %v1630, 1.442695
    %v1642 = vpow.pop %v1641
    %v1643 = vmul.f32 %v1631, 1.442695
    %v1644 = vpow.pop %v1643
    %v1645 = vmul.f32 %v1632, 1.442695
    %v1646 = vpow.pop %v1645
    %v1647 = vmul.f32 %v1633, 1.442695
    %v1648 = vpow.pop %v1647
    %v1649 = vmul.f32 %v1634, 1.442695
    %v1650 = vpow.pop %v1649
    %v1651 = vmul.f32 %v1619, %v1636
    %v1652 = vmul.f32 %v1620, %v1638
    %v1653 = vmul.f32 %v1621, %v1640
    %v1654 = vmul.f32 %v1622, %v1642
    %v1655 = vmul.f32 %v1623, %v1644
    %v1656 = vmul.f32 %v1624, %v1646
    %v1657 = vmul.f32 %v1625, %v1648
    %v1658 = vmul.f32 %v1626, %v1650
    %v1659 = vadd.f32 %v1310, %v1651
    %v1660 = vadd.f32 %v1312, %v1652
    %v1661 = vadd.f32 %v1351, %v1653
    %v1662 = vadd.f32 %v1353, %v1654
    %v1663 = vadd.f32 %v1392, %v1655
    %v1664 = vadd.f32 %v1394, %v1656
    %v1665 = vadd.f32 %v1433, %v1657
    %v1666 = vadd.f32 %v1435, %v1658
    %v1667 = vld [vmem:[#allocation13 + $0x12] sm:$0x1]
    %v1668 = vpack.c.bf16 %v1659, %v1659
    %v1669 = vpack.c.bf16 %v1660, %v1660
    %v1670 = vpack.c.bf16 %v1661, %v1661
    %v1671 = vpack.c.bf16 %v1662, %v1662
    %v1672 = vpack.c.bf16 %v1663, %v1663
    %v1673 = vpack.c.bf16 %v1664, %v1664
    %v1674 = vpack.c.bf16 %v1665, %v1665
    %v1675 = vpack.c.bf16 %v1666, %v1666
    %v1676 = vld [vmem:[#allocation8] sm:$0xf]
    %v1677 = vld [vmem:[#allocation8 + $0x4] sm:$0xf]
    %v1678 = vld [vmem:[#allocation8 + $0x8] sm:$0xf]
    %v1679 = vld [vmem:[#allocation8 + $0xc] sm:$0xf]
    %v1680 = vld [vmem:[#allocation8 + $0x10] sm:$0xf]
    %v1681 = vld [vmem:[#allocation8 + $0x14] sm:$0xf]
    %v1682 = vld [vmem:[#allocation8 + $0x18] sm:$0xf]
    %v1683 = vld [vmem:[#allocation8 + $0x1c] sm:$0xf]
    %v1684 = vld [vmem:[#allocation8 + $0x20] sm:$0xf]
    %v1685 = vld [vmem:[#allocation8 + $0x24] sm:$0xf]
    %v1686 = vld [vmem:[#allocation8 + $0x28] sm:$0xf]
    %v1687 = vld [vmem:[#allocation8 + $0x2c] sm:$0xf]
    %v1688 = vld [vmem:[#allocation8 + $0x30] sm:$0xf]
    %v1689 = vld [vmem:[#allocation8 + $0x34] sm:$0xf]
    %v1690 = vld [vmem:[#allocation8 + $0x38] sm:$0xf]
    %v1691 = vld [vmem:[#allocation8 + $0x3c] sm:$0xf]
    %v1692 = vld [vmem:[#allocation8 + $0x40] sm:$0xf]
    %v1693 = vld [vmem:[#allocation8 + $0x44] sm:$0xf]
    %v1694 = vld [vmem:[#allocation8 + $0x48] sm:$0xf]
    %v1695 = vld [vmem:[#allocation8 + $0x4c] sm:$0xf]
    %v1696 = vld [vmem:[#allocation8 + $0x50] sm:$0xf]
    %v1697 = vld [vmem:[#allocation8 + $0x54] sm:$0xf]
    %v1698 = vld [vmem:[#allocation8 + $0x58] sm:$0xf]
    %v1699 = vld [vmem:[#allocation8 + $0x5c] sm:$0xf]
    %v1700 = vld [vmem:[#allocation8 + $0x60] sm:$0xf]
    %v1701 = vld [vmem:[#allocation8 + $0x64] sm:$0xf]
    %v1702 = vld [vmem:[#allocation8 + $0x68] sm:$0xf]
    %v1703 = vld [vmem:[#allocation8 + $0x6c] sm:$0xf]
    %v1704 = vld [vmem:[#allocation8 + $0x70] sm:$0xf]
    %v1705 = vld [vmem:[#allocation8 + $0x74] sm:$0xf]
    %v1706 = vld [vmem:[#allocation8 + $0x78] sm:$0xf]
    %v1707 = vld [vmem:[#allocation8 + $0x7c] sm:$0xf]
    %v1708 = vld [vmem:[#allocation8 + $0x80] sm:$0xf]
    %v1709 = vld [vmem:[#allocation8 + $0x84] sm:$0xf]
    %v1710 = vld [vmem:[#allocation8 + $0x88] sm:$0xf]
    %v1711 = vld [vmem:[#allocation8 + $0x8c] sm:$0xf]
    %v1712 = vld [vmem:[#allocation8 + $0x90] sm:$0xf]
    %v1713 = vld [vmem:[#allocation8 + $0x94] sm:$0xf]
    %v1714 = vld [vmem:[#allocation8 + $0x98] sm:$0xf]
    %v1715 = vld [vmem:[#allocation8 + $0x9c] sm:$0xf]
    %v1716 = vld [vmem:[#allocation8 + $0xa0] sm:$0xf]
    %v1717 = vld [vmem:[#allocation8 + $0xa4] sm:$0xf]
    %v1718 = vld [vmem:[#allocation8 + $0xa8] sm:$0xf]
    %v1719 = vld [vmem:[#allocation8 + $0xac] sm:$0xf]
    %v1720 = vld [vmem:[#allocation8 + $0xb0] sm:$0xf]
    %v1721 = vld [vmem:[#allocation8 + $0xb4] sm:$0xf]
    %v1722 = vld [vmem:[#allocation8 + $0xb8] sm:$0xf]
    %v1723 = vld [vmem:[#allocation8 + $0xbc] sm:$0xf]
    %v1724 = vld [vmem:[#allocation8 + $0xc0] sm:$0xf]
    %v1725 = vld [vmem:[#allocation8 + $0xc4] sm:$0xf]
    %v1726 = vld [vmem:[#allocation8 + $0xc8] sm:$0xf]
    %v1727 = vld [vmem:[#allocation8 + $0xcc] sm:$0xf]
    %v1728 = vld [vmem:[#allocation8 + $0xd0] sm:$0xf]
    %v1729 = vld [vmem:[#allocation8 + $0xd4] sm:$0xf]
    %v1730 = vld [vmem:[#allocation8 + $0xd8] sm:$0xf]
    %v1731 = vld [vmem:[#allocation8 + $0xdc] sm:$0xf]
    %v1732 = vld [vmem:[#allocation8 + $0xe0] sm:$0xf]
    %v1733 = vld [vmem:[#allocation8 + $0xe4] sm:$0xf]
    %v1734 = vld [vmem:[#allocation8 + $0xe8] sm:$0xf]
    %v1735 = vld [vmem:[#allocation8 + $0xec] sm:$0xf]
    %v1736 = vld [vmem:[#allocation8 + $0xf0] sm:$0xf]
    %v1737 = vld [vmem:[#allocation8 + $0xf4] sm:$0xf]
    %v1738 = vld [vmem:[#allocation8 + $0xf8] sm:$0xf]
    %v1739 = vld [vmem:[#allocation8 + $0xfc] sm:$0xf]
    %v1740 = vld [vmem:[#allocation8 + $0x100] sm:$0xf]
    %v1741 = vld [vmem:[#allocation8 + $0x104] sm:$0xf]
    %v1742 = vld [vmem:[#allocation8 + $0x108] sm:$0xf]
    %v1743 = vld [vmem:[#allocation8 + $0x10c] sm:$0xf]
    %v1744 = vld [vmem:[#allocation8 + $0x110] sm:$0xf]
    %v1745 = vld [vmem:[#allocation8 + $0x114] sm:$0xf]
    %v1746 = vld [vmem:[#allocation8 + $0x118] sm:$0xf]
    %v1747 = vld [vmem:[#allocation8 + $0x11c] sm:$0xf]
    %v1748 = vld [vmem:[#allocation8 + $0x120] sm:$0xf]
    %v1749 = vld [vmem:[#allocation8 + $0x124] sm:$0xf]
    %v1750 = vld [vmem:[#allocation8 + $0x128] sm:$0xf]
    %v1751 = vld [vmem:[#allocation8 + $0x12c] sm:$0xf]
    %v1752 = vld [vmem:[#allocation8 + $0x130] sm:$0xf]
    %v1753 = vld [vmem:[#allocation8 + $0x134] sm:$0xf]
    %v1754 = vld [vmem:[#allocation8 + $0x138] sm:$0xf]
    %v1755 = vld [vmem:[#allocation8 + $0x13c] sm:$0xf]
    %v1756 = vld [vmem:[#allocation8 + $0x140] sm:$0xf]
    %v1757 = vld [vmem:[#allocation8 + $0x144] sm:$0xf]
    %v1758 = vld [vmem:[#allocation8 + $0x148] sm:$0xf]
    %v1759 = vld [vmem:[#allocation8 + $0x14c] sm:$0xf]
    %v1760 = vld [vmem:[#allocation8 + $0x150] sm:$0xf]
    %v1761 = vld [vmem:[#allocation8 + $0x154] sm:$0xf]
    %v1762 = vld [vmem:[#allocation8 + $0x158] sm:$0xf]
    %v1763 = vld [vmem:[#allocation8 + $0x15c] sm:$0xf]
    %v1764 = vld [vmem:[#allocation8 + $0x160] sm:$0xf]
    %v1765 = vld [vmem:[#allocation8 + $0x164] sm:$0xf]
    %v1766 = vld [vmem:[#allocation8 + $0x168] sm:$0xf]
    %v1767 = vld [vmem:[#allocation8 + $0x16c] sm:$0xf]
    %v1768 = vld [vmem:[#allocation8 + $0x170] sm:$0xf]
    %v1769 = vld [vmem:[#allocation8 + $0x174] sm:$0xf]
    %v1770 = vld [vmem:[#allocation8 + $0x178] sm:$0xf]
    %v1771 = vld [vmem:[#allocation8 + $0x17c] sm:$0xf]
    %v1772 = vld [vmem:[#allocation8 + $0x180] sm:$0xf]
    %v1773 = vld [vmem:[#allocation8 + $0x184] sm:$0xf]
    %v1774 = vld [vmem:[#allocation8 + $0x188] sm:$0xf]
    %v1775 = vld [vmem:[#allocation8 + $0x18c] sm:$0xf]
    %v1776 = vld [vmem:[#allocation8 + $0x190] sm:$0xf]
    %v1777 = vld [vmem:[#allocation8 + $0x194] sm:$0xf]
    %v1778 = vld [vmem:[#allocation8 + $0x198] sm:$0xf]
    %v1779 = vld [vmem:[#allocation8 + $0x19c] sm:$0xf]
    %v1780 = vld [vmem:[#allocation8 + $0x1a0] sm:$0xf]
    %v1781 = vld [vmem:[#allocation8 + $0x1a4] sm:$0xf]
    %v1782 = vld [vmem:[#allocation8 + $0x1a8] sm:$0xf]
    %v1783 = vld [vmem:[#allocation8 + $0x1ac] sm:$0xf]
    %v1784 = vld [vmem:[#allocation8 + $0x1b0] sm:$0xf]
    %v1785 = vld [vmem:[#allocation8 + $0x1b4] sm:$0xf]
    %v1786 = vld [vmem:[#allocation8 + $0x1b8] sm:$0xf]
    %v1787 = vld [vmem:[#allocation8 + $0x1bc] sm:$0xf]
    %v1788 = vld [vmem:[#allocation8 + $0x1c0] sm:$0xf]
    %v1789 = vld [vmem:[#allocation8 + $0x1c4] sm:$0xf]
    %v1790 = vld [vmem:[#allocation8 + $0x1c8] sm:$0xf]
    %v1791 = vld [vmem:[#allocation8 + $0x1cc] sm:$0xf]
    %v1792 = vld [vmem:[#allocation8 + $0x1d0] sm:$0xf]
    %v1793 = vld [vmem:[#allocation8 + $0x1d4] sm:$0xf]
    %v1794 = vld [vmem:[#allocation8 + $0x1d8] sm:$0xf]
    %v1795 = vld [vmem:[#allocation8 + $0x1dc] sm:$0xf]
    %v1796 = vld [vmem:[#allocation8 + $0x1e0] sm:$0xf]
    %v1797 = vld [vmem:[#allocation8 + $0x1e4] sm:$0xf]
    %v1798 = vld [vmem:[#allocation8 + $0x1e8] sm:$0xf]
    %v1799 = vld [vmem:[#allocation8 + $0x1ec] sm:$0xf]
    %v1800 = vld [vmem:[#allocation8 + $0x1f0] sm:$0xf]
    %v1801 = vld [vmem:[#allocation8 + $0x1f4] sm:$0xf]
    %v1802 = vld [vmem:[#allocation8 + $0x1f8] sm:$0xf]
    %v1803 = vld [vmem:[#allocation8 + $0x1fc] sm:$0xf]
    %v1805 = vlaneseq
    %v1806 = vshrl.u32 %v1805, 7
    %v1807 = vsub.s32 0, %v1806
    %v1808 = vrot.slane %v1667, %v1807
    %v1938 = vunpack.c.l.b16 %v1676
    %v1939 = vunpack.c.l.b16 %v1677
    %v1940 = vunpack.c.l.b16 %v1678
    %v1941 = vunpack.c.l.b16 %v1679
    %v1942 = vunpack.c.l.b16 %v1680
    %v1943 = vunpack.c.l.b16 %v1681
    %v1944 = vunpack.c.l.b16 %v1682
    %v1945 = vunpack.c.l.b16 %v1683
    %v1946 = vunpack.c.l.b16 %v1684
    %v1947 = vunpack.c.l.b16 %v1685
    %v1948 = vunpack.c.l.b16 %v1686
    %v1949 = vunpack.c.l.b16 %v1687
    %v1950 = vunpack.c.l.b16 %v1688
    %v1951 = vunpack.c.l.b16 %v1689
    %v1952 = vunpack.c.l.b16 %v1690
    %v1953 = vunpack.c.l.b16 %v1691
    %v1954 = vunpack.c.l.b16 %v1692
    %v1955 = vunpack.c.l.b16 %v1693
    %v1956 = vunpack.c.l.b16 %v1694
    %v1957 = vunpack.c.l.b16 %v1695
    %v1958 = vunpack.c.l.b16 %v1696
    %v1959 = vunpack.c.l.b16 %v1697
    %v1960 = vunpack.c.l.b16 %v1698
    %v1961 = vunpack.c.l.b16 %v1699
    %v1962 = vunpack.c.l.b16 %v1700
    %v1963 = vunpack.c.l.b16 %v1701
    %v1964 = vunpack.c.l.b16 %v1702
    %v1965 = vunpack.c.l.b16 %v1703
    %v1966 = vunpack.c.l.b16 %v1704
    %v1967 = vunpack.c.l.b16 %v1705
    %v1968 = vunpack.c.l.b16 %v1706
    %v1969 = vunpack.c.l.b16 %v1707
    %v1970 = vunpack.c.l.b16 %v1708
    %v1971 = vunpack.c.l.b16 %v1709
    %v1972 = vunpack.c.l.b16 %v1710
    %v1973 = vunpack.c.l.b16 %v1711
    %v1974 = vunpack.c.l.b16 %v1712
    %v1975 = vunpack.c.l.b16 %v1713
    %v1976 = vunpack.c.l.b16 %v1714
    %v1977 = vunpack.c.l.b16 %v1715
    %v1978 = vunpack.c.l.b16 %v1716
    %v1979 = vunpack.c.l.b16 %v1717
    %v1980 = vunpack.c.l.b16 %v1718
    %v1981 = vunpack.c.l.b16 %v1719
    %v1982 = vunpack.c.l.b16 %v1720
    %v1983 = vunpack.c.l.b16 %v1721
    %v1984 = vunpack.c.l.b16 %v1722
    %v1985 = vunpack.c.l.b16 %v1723
    %v1986 = vunpack.c.l.b16 %v1724
    %v1987 = vunpack.c.l.b16 %v1725
    %v1988 = vunpack.c.l.b16 %v1726
    %v1989 = vunpack.c.l.b16 %v1727
    %v1990 = vunpack.c.l.b16 %v1728
    %v1991 = vunpack.c.l.b16 %v1729
    %v1992 = vunpack.c.l.b16 %v1730
    %v1993 = vunpack.c.l.b16 %v1731
    %v1994 = vunpack.c.l.b16 %v1732
    %v1995 = vunpack.c.l.b16 %v1733
    %v1996 = vunpack.c.l.b16 %v1734
    %v1997 = vunpack.c.l.b16 %v1735
    %v1998 = vunpack.c.l.b16 %v1736
    %v1999 = vunpack.c.l.b16 %v1737
    %v2000 = vunpack.c.l.b16 %v1738
    %v2001 = vunpack.c.l.b16 %v1739
    %v2002 = vunpack.c.l.b16 %v1740
    %v2003 = vunpack.c.l.b16 %v1741
    %v2004 = vunpack.c.l.b16 %v1742
    %v2005 = vunpack.c.l.b16 %v1743
    %v2006 = vunpack.c.l.b16 %v1744
    %v2007 = vunpack.c.l.b16 %v1745
    %v2008 = vunpack.c.l.b16 %v1746
    %v2009 = vunpack.c.l.b16 %v1747
    %v2010 = vunpack.c.l.b16 %v1748
    %v2011 = vunpack.c.l.b16 %v1749
    %v2012 = vunpack.c.l.b16 %v1750
    %v2013 = vunpack.c.l.b16 %v1751
    %v2014 = vunpack.c.l.b16 %v1752
    %v2015 = vunpack.c.l.b16 %v1753
    %v2016 = vunpack.c.l.b16 %v1754
    %v2017 = vunpack.c.l.b16 %v1755
    %v2018 = vunpack.c.l.b16 %v1756
    %v2019 = vunpack.c.l.b16 %v1757
    %v2020 = vunpack.c.l.b16 %v1758
    %v2021 = vunpack.c.l.b16 %v1759
    %v2022 = vunpack.c.l.b16 %v1760
    %v2023 = vunpack.c.l.b16 %v1761
    %v2024 = vunpack.c.l.b16 %v1762
    %v2025 = vunpack.c.l.b16 %v1763
    %v2026 = vunpack.c.l.b16 %v1764
    %v2027 = vunpack.c.l.b16 %v1765
    %v2028 = vunpack.c.l.b16 %v1766
    %v2029 = vunpack.c.l.b16 %v1767
    %v2030 = vunpack.c.l.b16 %v1768
    %v2031 = vunpack.c.l.b16 %v1769
    %v2032 = vunpack.c.l.b16 %v1770
    %v2033 = vunpack.c.l.b16 %v1771
    %v2034 = vunpack.c.l.b16 %v1772
    %v2035 = vunpack.c.l.b16 %v1773
    %v2036 = vunpack.c.l.b16 %v1774
    %v2037 = vunpack.c.l.b16 %v1775
    %v2038 = vunpack.c.l.b16 %v1776
    %v2039 = vunpack.c.l.b16 %v1777
    %v2040 = vunpack.c.l.b16 %v1778
    %v2041 = vunpack.c.l.b16 %v1779
    %v2042 = vunpack.c.l.b16 %v1780
    %v2043 = vunpack.c.l.b16 %v1781
    %v2044 = vunpack.c.l.b16 %v1782
    %v2045 = vunpack.c.l.b16 %v1783
    %v2046 = vunpack.c.l.b16 %v1784
    %v2047 = vunpack.c.l.b16 %v1785
    %v2048 = vunpack.c.l.b16 %v1786
    %v2049 = vunpack.c.l.b16 %v1787
    %v2050 = vunpack.c.l.b16 %v1788
    %v2051 = vunpack.c.l.b16 %v1789
    %v2052 = vunpack.c.l.b16 %v1790
    %v2053 = vunpack.c.l.b16 %v1791
    %v2054 = vunpack.c.l.b16 %v1792
    %v2055 = vunpack.c.l.b16 %v1793
    %v2056 = vunpack.c.l.b16 %v1794
    %v2057 = vunpack.c.l.b16 %v1795
    %v2058 = vunpack.c.l.b16 %v1796
    %v2059 = vunpack.c.l.b16 %v1797
    %v2060 = vunpack.c.l.b16 %v1798
    %v2061 = vunpack.c.l.b16 %v1799
    %v2062 = vunpack.c.l.b16 %v1800
    %v2063 = vunpack.c.l.b16 %v1801
    %v2064 = vunpack.c.l.b16 %v1802
    %v2065 = vunpack.c.l.b16 %v1803
    %v2066 = vpack.c.b16 %v1939, %v1938
    %v2067 = vpack.c.b16 %v1941, %v1940
    %v2068 = vpack.c.b16 %v1943, %v1942
    %v2069 = vpack.c.b16 %v1945, %v1944
    %v2070 = vpack.c.b16 %v1947, %v1946
    %v2071 = vpack.c.b16 %v1949, %v1948
    %v2072 = vpack.c.b16 %v1951, %v1950
    %v2073 = vpack.c.b16 %v1953, %v1952
    %v2074 = vpack.c.b16 %v1955, %v1954
    %v2075 = vpack.c.b16 %v1957, %v1956
    %v2076 = vpack.c.b16 %v1959, %v1958
    %v2077 = vpack.c.b16 %v1961, %v1960
    %v2078 = vpack.c.b16 %v1963, %v1962
    %v2079 = vpack.c.b16 %v1965, %v1964
    %v2080 = vpack.c.b16 %v1967, %v1966
    %v2081 = vpack.c.b16 %v1969, %v1968
    %v2082 = vpack.c.b16 %v1971, %v1970
    %v2083 = vpack.c.b16 %v1973, %v1972
    %v2084 = vpack.c.b16 %v1975, %v1974
    %v2085 = vpack.c.b16 %v1977, %v1976
    %v2086 = vpack.c.b16 %v1979, %v1978
    %v2087 = vpack.c.b16 %v1981, %v1980
    %v2088 = vpack.c.b16 %v1983, %v1982
    %v2089 = vpack.c.b16 %v1985, %v1984
    %v2090 = vpack.c.b16 %v1987, %v1986
    %v2091 = vpack.c.b16 %v1989, %v1988
    %v2092 = vpack.c.b16 %v1991, %v1990
    %v2093 = vpack.c.b16 %v1993, %v1992
    %v2094 = vpack.c.b16 %v1995, %v1994
    %v2095 = vpack.c.b16 %v1997, %v1996
    %v2096 = vpack.c.b16 %v1999, %v1998
    %v2097 = vpack.c.b16 %v2001, %v2000
    %v2098 = vpack.c.b16 %v2003, %v2002
    %v2099 = vpack.c.b16 %v2005, %v2004
    %v2100 = vpack.c.b16 %v2007, %v2006
    %v2101 = vpack.c.b16 %v2009, %v2008
    %v2102 = vpack.c.b16 %v2011, %v2010
    %v2103 = vpack.c.b16 %v2013, %v2012
    %v2104 = vpack.c.b16 %v2015, %v2014
    %v2105 = vpack.c.b16 %v2017, %v2016
    %v2106 = vpack.c.b16 %v2019, %v2018
    %v2107 = vpack.c.b16 %v2021, %v2020
    %v2108 = vpack.c.b16 %v2023, %v2022
    %v2109 = vpack.c.b16 %v2025, %v2024
    %v2110 = vpack.c.b16 %v2027, %v2026
    %v2111 = vpack.c.b16 %v2029, %v2028
    %v2112 = vpack.c.b16 %v2031, %v2030
    %v2113 = vpack.c.b16 %v2033, %v2032
    %v2114 = vpack.c.b16 %v2035, %v2034
    %v2115 = vpack.c.b16 %v2037, %v2036
    %v2116 = vpack.c.b16 %v2039, %v2038
    %v2117 = vpack.c.b16 %v2041, %v2040
    %v2118 = vpack.c.b16 %v2043, %v2042
    %v2119 = vpack.c.b16 %v2045, %v2044
    %v2120 = vpack.c.b16 %v2047, %v2046
    %v2121 = vpack.c.b16 %v2049, %v2048
    %v2122 = vpack.c.b16 %v2051, %v2050
    %v2123 = vpack.c.b16 %v2053, %v2052
    %v2124 = vpack.c.b16 %v2055, %v2054
    %v2125 = vpack.c.b16 %v2057, %v2056
    %v2126 = vpack.c.b16 %v2059, %v2058
    %v2127 = vpack.c.b16 %v2061, %v2060
    %v2128 = vpack.c.b16 %v2063, %v2062
    %v2129 = vpack.c.b16 %v2065, %v2064
    %2194 = vmatprep.subr.bf16.mxu0 0
    %2195 = vmatpush1.bf16.msra.mxu0 %v2066
    %2196 = vmatprep.subr.bf16.mxu0 0
    %2197 = vmatpush1.bf16.msra.mxu0 %v2067
    %2198 = vmatprep.subr.bf16.mxu0 0
    %2199 = vmatpush1.bf16.msra.mxu0 %v2068
    %2200 = vmatprep.subr.bf16.mxu0 0
    %2201 = vmatpush1.bf16.msra.mxu0 %v2069
    %2202 = vmatprep.subr.bf16.mxu0 0
    %2203 = vmatpush1.bf16.msra.mxu0 %v2070
    %2204 = vmatprep.subr.bf16.mxu0 0
    %2205 = vmatpush1.bf16.msra.mxu0 %v2071
    %2206 = vmatprep.subr.bf16.mxu0 0
    %2207 = vmatpush1.bf16.msra.mxu0 %v2072
    %2208 = vmatprep.subr.bf16.mxu0 0
    %2209 = vmatpush1.bf16.msra.mxu0 %v2073
    %2210 = vmatprep.subr.bf16.mxu0 0
    %2211 = vmatpush1.bf16.msra.mxu0 %v2074
    %2212 = vmatprep.subr.bf16.mxu0 0
    %2213 = vmatpush1.bf16.msra.mxu0 %v2075
    %2214 = vmatprep.subr.bf16.mxu0 0
    %2215 = vmatpush1.bf16.msra.mxu0 %v2076
    %2216 = vmatprep.subr.bf16.mxu0 0
    %2217 = vmatpush1.bf16.msra.mxu0 %v2077
    %2218 = vmatprep.subr.bf16.mxu0 0
    %2219 = vmatpush1.bf16.msra.mxu0 %v2078
    %2220 = vmatprep.subr.bf16.mxu0 0
    %2221 = vmatpush1.bf16.msra.mxu0 %v2079
    %2222 = vmatprep.subr.bf16.mxu0 0
    %2223 = vmatpush1.bf16.msra.mxu0 %v2080
    %2224 = vmatprep.subr.bf16.mxu0 0
    %2225 = vmatpush1.bf16.msra.mxu0 %v2081
    %2226 = vmatprep.mubr.bf16.mxu0 %v1669
    %2227 = vmatmul.mubr.bf16.gmra.mrb[0].mxu0 %v1668
    %v2228 = vpop.f32.mrb[0].mxu0
    %v2229 = vadd.f32 %v1808, %v2228
    %v2230 = vpop.f32.mrb[0].mxu0
    %v2231 = vpop.f32.mrb[0].mxu0
    %v2232 = vpop.f32.mrb[0].mxu0
    %2233 = vdwg.mxu0
    %2234 = vmatprep.subr.bf16.mxu0 0
    %2235 = vmatpush1.bf16.msra.mxu0 %v2082
    %2236 = vmatprep.subr.bf16.mxu0 0
    %2237 = vmatpush1.bf16.msra.mxu0 %v2083
    %2238 = vmatprep.subr.bf16.mxu0 0
    %2239 = vmatpush1.bf16.msra.mxu0 %v2084
    %2240 = vmatprep.subr.bf16.mxu0 0
    %2241 = vmatpush1.bf16.msra.mxu0 %v2085
    %2242 = vmatprep.subr.bf16.mxu0 0
    %2243 = vmatpush1.bf16.msra.mxu0 %v2086
    %2244 = vmatprep.subr.bf16.mxu0 0
    %2245 = vmatpush1.bf16.msra.mxu0 %v2087
    %2246 = vmatprep.subr.bf16.mxu0 0
    %2247 = vmatpush1.bf16.msra.mxu0 %v2088
    %2248 = vmatprep.subr.bf16.mxu0 0
    %2249 = vmatpush1.bf16.msra.mxu0 %v2089
    %2250 = vmatprep.subr.bf16.mxu0 0
    %2251 = vmatpush1.bf16.msra.mxu0 %v2090
    %2252 = vmatprep.subr.bf16.mxu0 0
    %2253 = vmatpush1.bf16.msra.mxu0 %v2091
    %2254 = vmatprep.subr.bf16.mxu0 0
    %2255 = vmatpush1.bf16.msra.mxu0 %v2092
    %2256 = vmatprep.subr.bf16.mxu0 0
    %2257 = vmatpush1.bf16.msra.mxu0 %v2093
    %2258 = vmatprep.subr.bf16.mxu0 0
    %2259 = vmatpush1.bf16.msra.mxu0 %v2094
    %2260 = vmatprep.subr.bf16.mxu0 0
    %2261 = vmatpush1.bf16.msra.mxu0 %v2095
    %2262 = vmatprep.subr.bf16.mxu0 0
    %2263 = vmatpush1.bf16.msra.mxu0 %v2096
    %2264 = vmatprep.subr.bf16.mxu0 0
    %2265 = vmatpush1.bf16.msra.mxu0 %v2097
    %2266 = vmatprep.mubr.bf16.mxu0 %v1671
    %2267 = vmatmul.mubr.bf16.gmra.mrb[0].mxu0 %v1670
    %v2268 = vpop.f32.mrb[0].mxu0
    %v2269 = vadd.f32 %v2229, %v2268
    %v2270 = vpop.f32.mrb[0].mxu0
    %v2271 = vpop.f32.mrb[0].mxu0
    %v2272 = vpop.f32.mrb[0].mxu0
    %2273 = vdwg.mxu0
    %2274 = vmatprep.subr.bf16.mxu0 0
    %2275 = vmatpush1.bf16.msra.mxu0 %v2098
    %2276 = vmatprep.subr.bf16.mxu0 0
    %2277 = vmatpush1.bf16.msra.mxu0 %v2099
    %2278 = vmatprep.subr.bf16.mxu0 0
    %2279 = vmatpush1.bf16.msra.mxu0 %v2100
    %2280 = vmatprep.subr.bf16.mxu0 0
    %2281 = vmatpush1.bf16.msra.mxu0 %v2101
    %2282 = vmatprep.subr.bf16.mxu0 0
    %2283 = vmatpush1.bf16.msra.mxu0 %v2102
    %2284 = vmatprep.subr.bf16.mxu0 0
    %2285 = vmatpush1.bf16.msra.mxu0 %v2103
    %2286 = vmatprep.subr.bf16.mxu0 0
    %2287 = vmatpush1.bf16.msra.mxu0 %v2104
    %2288 = vmatprep.subr.bf16.mxu0 0
    %2289 = vmatpush1.bf16.msra.mxu0 %v2105
    %2290 = vmatprep.subr.bf16.mxu0 0
    %2291 = vmatpush1.bf16.msra.mxu0 %v2106
    %2292 = vmatprep.subr.bf16.mxu0 0
    %2293 = vmatpush1.bf16.msra.mxu0 %v2107
    %2294 = vmatprep.subr.bf16.mxu0 0
    %2295 = vmatpush1.bf16.msra.mxu0 %v2108
    %2296 = vmatprep.subr.bf16.mxu0 0
    %2297 = vmatpush1.bf16.msra.mxu0 %v2109
    %2298 = vmatprep.subr.bf16.mxu0 0
    %2299 = vmatpush1.bf16.msra.mxu0 %v2110
    %2300 = vmatprep.subr.bf16.mxu0 0
    %2301 = vmatpush1.bf16.msra.mxu0 %v2111
    %2302 = vmatprep.subr.bf16.mxu0 0
    %2303 = vmatpush1.bf16.msra.mxu0 %v2112
    %2304 = vmatprep.subr.bf16.mxu0 0
    %2305 = vmatpush1.bf16.msra.mxu0 %v2113
    %2306 = vmatprep.mubr.bf16.mxu0 %v1673
    %2307 = vmatmul.mubr.bf16.gmra.mrb[0].mxu0 %v1672
    %v2308 = vpop.f32.mrb[0].mxu0
    %v2309 = vadd.f32 %v2269, %v2308
    %v2310 = vpop.f32.mrb[0].mxu0
    %v2311 = vpop.f32.mrb[0].mxu0
    %v2312 = vpop.f32.mrb[0].mxu0
    %2313 = vdwg.mxu0
    %2314 = vmatprep.subr.bf16.mxu0 0
    %2315 = vmatpush1.bf16.msra.mxu0 %v2114
    %2316 = vmatprep.subr.bf16.mxu0 0
    %2317 = vmatpush1.bf16.msra.mxu0 %v2115
    %2318 = vmatprep.subr.bf16.mxu0 0
    %2319 = vmatpush1.bf16.msra.mxu0 %v2116
    %2320 = vmatprep.subr.bf16.mxu0 0
    %2321 = vmatpush1.bf16.msra.mxu0 %v2117
    %2322 = vmatprep.subr.bf16.mxu0 0
    %2323 = vmatpush1.bf16.msra.mxu0 %v2118
    %2324 = vmatprep.subr.bf16.mxu0 0
    %2325 = vmatpush1.bf16.msra.mxu0 %v2119
    %2326 = vmatprep.subr.bf16.mxu0 0
    %2327 = vmatpush1.bf16.msra.mxu0 %v2120
    %2328 = vmatprep.subr.bf16.mxu0 0
    %2329 = vmatpush1.bf16.msra.mxu0 %v2121
    %2330 = vmatprep.subr.bf16.mxu0 0
    %2331 = vmatpush1.bf16.msra.mxu0 %v2122
    %2332 = vmatprep.subr.bf16.mxu0 0
    %2333 = vmatpush1.bf16.msra.mxu0 %v2123
    %2334 = vmatprep.subr.bf16.mxu0 0
    %2335 = vmatpush1.bf16.msra.mxu0 %v2124
    %2336 = vmatprep.subr.bf16.mxu0 0
    %2337 = vmatpush1.bf16.msra.mxu0 %v2125
    %2338 = vmatprep.subr.bf16.mxu0 0
    %2339 = vmatpush1.bf16.msra.mxu0 %v2126
    %2340 = vmatprep.subr.bf16.mxu0 0
    %2341 = vmatpush1.bf16.msra.mxu0 %v2127
    %2342 = vmatprep.subr.bf16.mxu0 0
    %2343 = vmatpush1.bf16.msra.mxu0 %v2128
    %2344 = vmatprep.subr.bf16.mxu0 0
    %2345 = vmatpush1.bf16.msra.mxu0 %v2129
    %2346 = vmatprep.mubr.bf16.mxu0 %v1675
    %2347 = vmatmul.mubr.bf16.gmra.mrb[0].mxu0 %v1674
    %v2348 = vpop.f32.mrb[0].mxu0
    %v2349 = vadd.f32 %v2309, %v2348
    %v2350 = vpop.f32.mrb[0].mxu0
    %v2351 = vpop.f32.mrb[0].mxu0
    %v2352 = vpop.f32.mrb[0].mxu0
    %2353 = vdwg.mxu0
    %v2354 = vmax.f32 %v2349, 0.0
    %v2355 = vld [vmem:[#allocation13 + $0x13] sm:$0x3]
    %v2356 = vpack.c.bf16 %v2354, %v2354
    %v2357 = vld [vmem:[#allocation10] sm:$0xff]
    %v2358 = vld [vmem:[#allocation10 + $0x8] sm:$0xff]
    %v2359 = vld [vmem:[#allocation10 + $0x10] sm:$0xff]
    %v2360 = vld [vmem:[#allocation10 + $0x18] sm:$0xff]
    %v2361 = vld [vmem:[#allocation10 + $0x20] sm:$0xff]
    %v2362 = vld [vmem:[#allocation10 + $0x28] sm:$0xff]
    %v2363 = vld [vmem:[#allocation10 + $0x30] sm:$0xff]
    %v2364 = vld [vmem:[#allocation10 + $0x38] sm:$0xff]
    %v2365 = vld [vmem:[#allocation10 + $0x40] sm:$0xff]
    %v2366 = vld [vmem:[#allocation10 + $0x48] sm:$0xff]
    %v2367 = vld [vmem:[#allocation10 + $0x50] sm:$0xff]
    %v2368 = vld [vmem:[#allocation10 + $0x58] sm:$0xff]
    %v2369 = vld [vmem:[#allocation10 + $0x60] sm:$0xff]
    %v2370 = vld [vmem:[#allocation10 + $0x68] sm:$0xff]
    %v2371 = vld [vmem:[#allocation10 + $0x70] sm:$0xff]
    %v2372 = vld [vmem:[#allocation10 + $0x78] sm:$0xff]
    %v2374 = vlaneseq
    %v2375 = vshrl.u32 %v2374, 7
    %v2376 = vsub.s32 0, %v2375
    %v2377 = vrot.slane %v2355, %v2376
    %v2378 = vlaneseq
    %v2379 = vshrl.u32 %v2378, 7
    %v2380 = vsub.s32 1, %v2379
    %v2381 = vrot.slane %v2355, %v2380
    %v2400 = vunpack.c.l.b16 %v2357
    %v2401 = vunpack.c.h.b16 %v2357
    %v2402 = vunpack.c.l.b16 %v2358
    %v2403 = vunpack.c.h.b16 %v2358
    %v2404 = vunpack.c.l.b16 %v2359
    %v2405 = vunpack.c.h.b16 %v2359
    %v2406 = vunpack.c.l.b16 %v2360
    %v2407 = vunpack.c.h.b16 %v2360
    %v2408 = vunpack.c.l.b16 %v2361
    %v2409 = vunpack.c.h.b16 %v2361
    %v2410 = vunpack.c.l.b16 %v2362
    %v2411 = vunpack.c.h.b16 %v2362
    %v2412 = vunpack.c.l.b16 %v2363
    %v2413 = vunpack.c.h.b16 %v2363
    %v2414 = vunpack.c.l.b16 %v2364
    %v2415 = vunpack.c.h.b16 %v2364
    %v2416 = vunpack.c.l.b16 %v2365
    %v2417 = vunpack.c.h.b16 %v2365
    %v2418 = vunpack.c.l.b16 %v2366
    %v2419 = vunpack.c.h.b16 %v2366
    %v2420 = vunpack.c.l.b16 %v2367
    %v2421 = vunpack.c.h.b16 %v2367
    %v2422 = vunpack.c.l.b16 %v2368
    %v2423 = vunpack.c.h.b16 %v2368
    %v2424 = vunpack.c.l.b16 %v2369
    %v2425 = vunpack.c.h.b16 %v2369
    %v2426 = vunpack.c.l.b16 %v2370
    %v2427 = vunpack.c.h.b16 %v2370
    %v2428 = vunpack.c.l.b16 %v2371
    %v2429 = vunpack.c.h.b16 %v2371
    %v2430 = vunpack.c.l.b16 %v2372
    %v2431 = vunpack.c.h.b16 %v2372
    %v2432 = vpack.c.b16 %v2402, %v2400
    %v2433 = vpack.c.b16 %v2403, %v2401
    %v2434 = vpack.c.b16 %v2406, %v2404
    %v2435 = vpack.c.b16 %v2407, %v2405
    %v2436 = vpack.c.b16 %v2410, %v2408
    %v2437 = vpack.c.b16 %v2411, %v2409
    %v2438 = vpack.c.b16 %v2414, %v2412
    %v2439 = vpack.c.b16 %v2415, %v2413
    %v2440 = vpack.c.b16 %v2418, %v2416
    %v2441 = vpack.c.b16 %v2419, %v2417
    %v2442 = vpack.c.b16 %v2422, %v2420
    %v2443 = vpack.c.b16 %v2423, %v2421
    %v2444 = vpack.c.b16 %v2426, %v2424
    %v2445 = vpack.c.b16 %v2427, %v2425
    %v2446 = vpack.c.b16 %v2430, %v2428
    %v2447 = vpack.c.b16 %v2431, %v2429
    %2464 = vmatprep.subr.bf16.mxu0 %v2433
    %2465 = vmatpush1.bf16.msra.mxu0 %v2432
    %2466 = vmatprep.subr.bf16.mxu0 %v2435
    %2467 = vmatpush1.bf16.msra.mxu0 %v2434
    %2468 = vmatprep.subr.bf16.mxu0 %v2437
    %2469 = vmatpush1.bf16.msra.mxu0 %v2436
    %2470 = vmatprep.subr.bf16.mxu0 %v2439
    %2471 = vmatpush1.bf16.msra.mxu0 %v2438
    %2472 = vmatprep.subr.bf16.mxu0 %v2441
    %2473 = vmatpush1.bf16.msra.mxu0 %v2440
    %2474 = vmatprep.subr.bf16.mxu0 %v2443
    %2475 = vmatpush1.bf16.msra.mxu0 %v2442
    %2476 = vmatprep.subr.bf16.mxu0 %v2445
    %2477 = vmatpush1.bf16.msra.mxu0 %v2444
    %2478 = vmatprep.subr.bf16.mxu0 %v2447
    %2479 = vmatpush1.bf16.msra.mxu0 %v2446
    %2480 = vmatprep.subr.bf16.mxu0 0
    %2481 = vmatpush1.bf16.msra.mxu0 0
    %2482 = vmatprep.subr.bf16.mxu0 0
    %2483 = vmatpush1.bf16.msra.mxu0 0
    %2484 = vmatprep.subr.bf16.mxu0 0
    %2485 = vmatpush1.bf16.msra.mxu0 0
    %2486 = vmatprep.subr.bf16.mxu0 0
    %2487 = vmatpush1.bf16.msra.mxu0 0
    %2488 = vmatprep.subr.bf16.mxu0 0
    %2489 = vmatpush1.bf16.msra.mxu0 0
    %2490 = vmatprep.subr.bf16.mxu0 0
    %2491 = vmatpush1.bf16.msra.mxu0 0
    %2492 = vmatprep.subr.bf16.mxu0 0
    %2493 = vmatpush1.bf16.msra.mxu0 0
    %2494 = vmatprep.subr.bf16.mxu0 0
    %2495 = vmatpush1.bf16.msra.mxu0 0
    %2496 = vmatprep.mubr.bf16.mxu0 0
    %2497 = vmatmul.mubr.bf16.gmra.mrb[0].mxu0 %v2356
    %v2498 = vpop.f32.mrb[0].mxu0
    %v2499 = vadd.f32 %v2377, %v2498
    %v2500 = vpop.f32.mrb[0].mxu0
    %v2501 = vadd.f32 %v2381, %v2500
    %v2502 = vpop.f32.mrb[0].mxu0
    %v2503 = vpop.f32.mrb[0].mxu0
    %2504 = vdwg.mxu0
    %v2505 = vmax.f32 %v2499, 0.0
    %v2506 = vmax.f32 %v2501, 0.0
    %v2507 = vld [vmem:[#allocation13 + $0x15] sm:$0x3]
    %v2508 = vpack.c.bf16 %v2505, %v2505
    %v2509 = vpack.c.bf16 %v2506, %v2506
    %v2510 = vld [vmem:[#allocation11] sm:$0xff]
    %v2511 = vld [vmem:[#allocation11 + $0x8] sm:$0xff]
    %v2512 = vld [vmem:[#allocation11 + $0x10] sm:$0xff]
    %v2513 = vld [vmem:[#allocation11 + $0x18] sm:$0xff]
    %v2514 = vld [vmem:[#allocation11 + $0x20] sm:$0xff]
    %v2515 = vld [vmem:[#allocation11 + $0x28] sm:$0xff]
    %v2516 = vld [vmem:[#allocation11 + $0x30] sm:$0xff]
    %v2517 = vld [vmem:[#allocation11 + $0x38] sm:$0xff]
    %v2518 = vld [vmem:[#allocation11 + $0x40] sm:$0xff]
    %v2519 = vld [vmem:[#allocation11 + $0x48] sm:$0xff]
    %v2520 = vld [vmem:[#allocation11 + $0x50] sm:$0xff]
    %v2521 = vld [vmem:[#allocation11 + $0x58] sm:$0xff]
    %v2522 = vld [vmem:[#allocation11 + $0x60] sm:$0xff]
    %v2523 = vld [vmem:[#allocation11 + $0x68] sm:$0xff]
    %v2524 = vld [vmem:[#allocation11 + $0x70] sm:$0xff]
    %v2525 = vld [vmem:[#allocation11 + $0x78] sm:$0xff]
    %v2526 = vld [vmem:[#allocation11 + $0x80] sm:$0xff]
    %v2527 = vld [vmem:[#allocation11 + $0x88] sm:$0xff]
    %v2528 = vld [vmem:[#allocation11 + $0x90] sm:$0xff]
    %v2529 = vld [vmem:[#allocation11 + $0x98] sm:$0xff]
    %v2530 = vld [vmem:[#allocation11 + $0xa0] sm:$0xff]
    %v2531 = vld [vmem:[#allocation11 + $0xa8] sm:$0xff]
    %v2532 = vld [vmem:[#allocation11 + $0xb0] sm:$0xff]
    %v2533 = vld [vmem:[#allocation11 + $0xb8] sm:$0xff]
    %v2534 = vld [vmem:[#allocation11 + $0xc0] sm:$0xff]
    %v2535 = vld [vmem:[#allocation11 + $0xc8] sm:$0xff]
    %v2536 = vld [vmem:[#allocation11 + $0xd0] sm:$0xff]
    %v2537 = vld [vmem:[#allocation11 + $0xd8] sm:$0xff]
    %v2538 = vld [vmem:[#allocation11 + $0xe0] sm:$0xff]
    %v2539 = vld [vmem:[#allocation11 + $0xe8] sm:$0xff]
    %v2540 = vld [vmem:[#allocation11 + $0xf0] sm:$0xff]
    %v2541 = vld [vmem:[#allocation11 + $0xf8] sm:$0xff]
    %v2543 = vlaneseq
    %v2544 = vshrl.u32 %v2543, 7
    %v2545 = vsub.s32 0, %v2544
    %v2546 = vrot.slane %v2507, %v2545
    %v2547 = vlaneseq
    %v2548 = vshrl.u32 %v2547, 7
    %v2549 = vsub.s32 1, %v2548
    %v2550 = vrot.slane %v2507, %v2549
    %v2585 = vunpack.c.l.b16 %v2510
    %v2586 = vunpack.c.h.b16 %v2510
    %v2587 = vunpack.c.l.b16 %v2511
    %v2588 = vunpack.c.h.b16 %v2511
    %v2589 = vunpack.c.l.b16 %v2512
    %v2590 = vunpack.c.h.b16 %v2512
    %v2591 = vunpack.c.l.b16 %v2513
    %v2592 = vunpack.c.h.b16 %v2513
    %v2593 = vunpack.c.l.b16 %v2514
    %v2594 = vunpack.c.h.b16 %v2514
    %v2595 = vunpack.c.l.b16 %v2515
    %v2596 = vunpack.c.h.b16 %v2515
    %v2597 = vunpack.c.l.b16 %v2516
    %v2598 = vunpack.c.h.b16 %v2516
    %v2599 = vunpack.c.l.b16 %v2517
    %v2600 = vunpack.c.h.b16 %v2517
    %v2601 = vunpack.c.l.b16 %v2518
    %v2602 = vunpack.c.h.b16 %v2518
    %v2603 = vunpack.c.l.b16 %v2519
    %v2604 = vunpack.c.h.b16 %v2519
    %v2605 = vunpack.c.l.b16 %v2520
    %v2606 = vunpack.c.h.b16 %v2520
    %v2607 = vunpack.c.l.b16 %v2521
    %v2608 = vunpack.c.h.b16 %v2521
    %v2609 = vunpack.c.l.b16 %v2522
    %v2610 = vunpack.c.h.b16 %v2522
    %v2611 = vunpack.c.l.b16 %v2523
    %v2612 = vunpack.c.h.b16 %v2523
    %v2613 = vunpack.c.l.b16 %v2524
    %v2614 = vunpack.c.h.b16 %v2524
    %v2615 = vunpack.c.l.b16 %v2525
    %v2616 = vunpack.c.h.b16 %v2525
    %v2617 = vunpack.c.l.b16 %v2526
    %v2618 = vunpack.c.h.b16 %v2526
    %v2619 = vunpack.c.l.b16 %v2527
    %v2620 = vunpack.c.h.b16 %v2527
    %v2621 = vunpack.c.l.b16 %v2528
    %v2622 = vunpack.c.h.b16 %v2528
    %v2623 = vunpack.c.l.b16 %v2529
    %v2624 = vunpack.c.h.b16 %v2529
    %v2625 = vunpack.c.l.b16 %v2530
    %v2626 = vunpack.c.h.b16 %v2530
    %v2627 = vunpack.c.l.b16 %v2531
    %v2628 = vunpack.c.h.b16 %v2531
    %v2629 = vunpack.c.l.b16 %v2532
    %v2630 = vunpack.c.h.b16 %v2532
    %v2631 = vunpack.c.l.b16 %v2533
    %v2632 = vunpack.c.h.b16 %v2533
    %v2633 = vunpack.c.l.b16 %v2534
    %v2634 = vunpack.c.h.b16 %v2534
    %v2635 = vunpack.c.l.b16 %v2535
    %v2636 = vunpack.c.h.b16 %v2535
    %v2637 = vunpack.c.l.b16 %v2536
    %v2638 = vunpack.c.h.b16 %v2536
    %v2639 = vunpack.c.l.b16 %v2537
    %v2640 = vunpack.c.h.b16 %v2537
    %v2641 = vunpack.c.l.b16 %v2538
    %v2642 = vunpack.c.h.b16 %v2538
    %v2643 = vunpack.c.l.b16 %v2539
    %v2644 = vunpack.c.h.b16 %v2539
    %v2645 = vunpack.c.l.b16 %v2540
    %v2646 = vunpack.c.h.b16 %v2540
    %v2647 = vunpack.c.l.b16 %v2541
    %v2648 = vunpack.c.h.b16 %v2541
    %v2649 = vpack.c.b16 %v2587, %v2585
    %v2650 = vpack.c.b16 %v2588, %v2586
    %v2651 = vpack.c.b16 %v2591, %v2589
    %v2652 = vpack.c.b16 %v2592, %v2590
    %v2653 = vpack.c.b16 %v2595, %v2593
    %v2654 = vpack.c.b16 %v2596, %v2594
    %v2655 = vpack.c.b16 %v2599, %v2597
    %v2656 = vpack.c.b16 %v2600, %v2598
    %v2657 = vpack.c.b16 %v2603, %v2601
    %v2658 = vpack.c.b16 %v2604, %v2602
    %v2659 = vpack.c.b16 %v2607, %v2605
    %v2660 = vpack.c.b16 %v2608, %v2606
    %v2661 = vpack.c.b16 %v2611, %v2609
    %v2662 = vpack.c.b16 %v2612, %v2610
    %v2663 = vpack.c.b16 %v2615, %v2613
    %v2664 = vpack.c.b16 %v2616, %v2614
    %v2665 = vpack.c.b16 %v2619, %v2617
    %v2666 = vpack.c.b16 %v2620, %v2618
    %v2667 = vpack.c.b16 %v2623, %v2621
    %v2668 = vpack.c.b16 %v2624, %v2622
    %v2669 = vpack.c.b16 %v2627, %v2625
    %v2670 = vpack.c.b16 %v2628, %v2626
    %v2671 = vpack.c.b16 %v2631, %v2629
    %v2672 = vpack.c.b16 %v2632, %v2630
    %v2673 = vpack.c.b16 %v2635, %v2633
    %v2674 = vpack.c.b16 %v2636, %v2634
    %v2675 = vpack.c.b16 %v2639, %v2637
    %v2676 = vpack.c.b16 %v2640, %v2638
    %v2677 = vpack.c.b16 %v2643, %v2641
    %v2678 = vpack.c.b16 %v2644, %v2642
    %v2679 = vpack.c.b16 %v2647, %v2645
    %v2680 = vpack.c.b16 %v2648, %v2646
    %2713 = vmatprep.subr.bf16.mxu0 %v2650
    %2714 = vmatpush1.bf16.msra.mxu0 %v2649
    %2715 = vmatprep.subr.bf16.mxu0 %v2652
    %2716 = vmatpush1.bf16.msra.mxu0 %v2651
    %2717 = vmatprep.subr.bf16.mxu0 %v2654
    %2718 = vmatpush1.bf16.msra.mxu0 %v2653
    %2719 = vmatprep.subr.bf16.mxu0 %v2656
    %2720 = vmatpush1.bf16.msra.mxu0 %v2655
    %2721 = vmatprep.subr.bf16.mxu0 %v2658
    %2722 = vmatpush1.bf16.msra.mxu0 %v2657
    %2723 = vmatprep.subr.bf16.mxu0 %v2660
    %2724 = vmatpush1.bf16.msra.mxu0 %v2659
    %2725 = vmatprep.subr.bf16.mxu0 %v2662
    %2726 = vmatpush1.bf16.msra.mxu0 %v2661
    %2727 = vmatprep.subr.bf16.mxu0 %v2664
    %2728 = vmatpush1.bf16.msra.mxu0 %v2663
    %2729 = vmatprep.subr.bf16.mxu0 %v2666
    %2730 = vmatpush1.bf16.msra.mxu0 %v2665
    %2731 = vmatprep.subr.bf16.mxu0 %v2668
    %2732 = vmatpush1.bf16.msra.mxu0 %v2667
    %2733 = vmatprep.subr.bf16.mxu0 %v2670
    %2734 = vmatpush1.bf16.msra.mxu0 %v2669
    %2735 = vmatprep.subr.bf16.mxu0 %v2672
    %2736 = vmatpush1.bf16.msra.mxu0 %v2671
    %2737 = vmatprep.subr.bf16.mxu0 %v2674
    %2738 = vmatpush1.bf16.msra.mxu0 %v2673
    %2739 = vmatprep.subr.bf16.mxu0 %v2676
    %2740 = vmatpush1.bf16.msra.mxu0 %v2675
    %2741 = vmatprep.subr.bf16.mxu0 %v2678
    %2742 = vmatpush1.bf16.msra.mxu0 %v2677
    %2743 = vmatprep.subr.bf16.mxu0 %v2680
    %2744 = vmatpush1.bf16.msra.mxu0 %v2679
    %2745 = vmatprep.mubr.bf16.mxu0 %v2509
    %2746 = vmatmul.mubr.bf16.gmra.mrb[0].mxu0 %v2508
    %v2747 = vpop.f32.mrb[0].mxu0
    %v2748 = vadd.f32 %v2546, %v2747
    %v2749 = vpop.f32.mrb[0].mxu0
    %v2750 = vadd.f32 %v2550, %v2749
    %v2751 = vpop.f32.mrb[0].mxu0
    %v2752 = vpop.f32.mrb[0].mxu0
    %2753 = vdwg.mxu0
    %v2754 = vmax.f32 %v2748, 0.0
    %v2755 = vmax.f32 %v2750, 0.0
    %v2756 = vxor.u32 %v2754, 2147483648
    %v2757 = vxor.u32 %v2755, 2147483648
    %v2758 = vmul.f32 %v2756, 1.442695
    %v2759 = vpow.pop %v2758
    %v2760 = vmul.f32 %v2757, 1.442695
    %v2761 = vpow.pop %v2760
    %v2762 = vadd.f32 %v2759, 1.0
    %v2763 = vadd.f32 %v2761, 1.0
    %v2764 = vrcp.pop %v2762
    %v2765 = vmul.f32 1.0, %v2764
    %v2766 = vrcp.pop %v2763
    %v2767 = vmul.f32 1.0, %v2766
    %2768 = vst [vmem:[%s9] sm:$0xff] %v2765
    %2769 = vst [vmem:[%s9 + $0x8] sm:$0xff] %v2767
    // Predicated region
    $region66: #{vae_multiplex_forward.1} parent=1 // pred_check
      _
    $region67: #{vae_multiplex_forward.1} parent=1 // pred_check_branch
      %2771 = sbr.rel (0) target = $region69
    $region68: #{vae_multiplex_forward.1} parent=1 // pred_region
      _
    $region69: #{vae_multiplex_forward.1} parent=1 // pred_fallthru
      _
    // Predicated region
    $region70: #{vae_multiplex_forward.1} parent=1 // pred_check
      _
    $region71: #{vae_multiplex_forward.1} parent=1 // pred_check_branch
      %2773 = sbr.rel (0) target = $region73
    $region72: #{vae_multiplex_forward.1} parent=1 // pred_region
      %s2775 = ssub.s32 1024, 1024
      %2776 = vsyncadd [#allocation4], %s2775
      %s2778 = sshll.u32 [#allocation14], 4
      %s2779 = int_to_ptr.vmem [resolvable:$true] %s2778
      %2781 = dma.vmem_to_hbm [thread:$0]  %s2779, 1024, %s10, [#allocation4]
    $region73: #{vae_multiplex_forward.1} parent=1 // pred_fallthru
      _
    // Predicated region
    $region74: #{vae_multiplex_forward.1} parent=1 // pred_check
      _
    $region75: #{vae_multiplex_forward.1} parent=1 // pred_check_branch
      %2783 = sbr.rel (0) target = $region77
    $region76: #{vae_multiplex_forward.1} parent=1 // pred_region
      %s2785 = ssub.s32 1024, 1024
      %2786 = vsyncadd [#allocation16], %s2785
      %s2788 = sshll.u32 [#allocation15], 4
      %s2789 = int_to_ptr.vmem [resolvable:$true] %s2788
      %2791 = dma.vmem_to_hbm [thread:$0]  %s2789, 1024, %s11, [#allocation16]
    $region77: #{vae_multiplex_forward.1} parent=1 // pred_fallthru
      _
    // Predicated region
    $region78: #{vae_multiplex_forward.1} parent=1 // pred_check
      _
    $region79: #{vae_multiplex_forward.1} parent=1 // pred_check_branch
      %2793 = sbr.rel (0) target = $region81
    $region80: #{vae_multiplex_forward.1} parent=1 // pred_region
      _
    $region81: #{vae_multiplex_forward.1} parent=1 // pred_fallthru
      _
    // Predicated region
    $region82: #{vae_multiplex_forward.1} parent=1 // pred_check
      _
    $region83: #{vae_multiplex_forward.1} parent=1 // pred_check_branch
      %2795 = sbr.rel (0) target = $region85
    $region84: #{vae_multiplex_forward.1} parent=1 // pred_region
      %2796 = dma.done [#allocation4], 1024
    $region85: #{vae_multiplex_forward.1} parent=1 // pred_fallthru
      _
    // Predicated region
    $region86: #{vae_multiplex_forward.1} parent=1 // pred_check
      _
    $region87: #{vae_multiplex_forward.1} parent=1 // pred_check_branch
      %2798 = sbr.rel (0) target = $region89
    $region88: #{vae_multiplex_forward.1} parent=1 // pred_region
      %2799 = dma.done [#allocation16], 1024
    $region89: #{vae_multiplex_forward.1} parent=1 // pred_fallthru
      _
    %2800 = vsyncpa [#allocation3], 1
    %2801 = vsyncpa [#allocation6], 1
    %2802 = vsyncpa [#allocation9], 1
    %2803 = vsyncpa [#allocation12], 1
    %2804 = vsyncpa [#allocation4], 1
    %2805 = vsyncpa [#allocation16], 1

</llo_original>
